<compile_context>
chip_gen: v7x
topology: tpu7x:2x2x1
jax: 0.10.0
libtpu: 0.0.40
codegen_flags: <defaults>
</compile_context>

<pallas_src>
import functools

import jax
import jax.numpy as jnp
import numpy as np
from jax import lax
from jax.experimental import pallas as pl
from jax.experimental.pallas import tpu as pltpu


# ----------------------------- Pallas kernel --------------------------------
def gru_head_kernel(emb_ref,      # (T*B, E)   time-major, flattened embeddings
                    wih_ref,      # (E, 3*HP)  W_ih.T, each gate padded to HP lanes
                    bih_ref,      # (1, 3*HP)
                    whh_ref,      # (HP, 3*HP) W_hh.T, rows+gate-cols zero padded
                    bhh_ref,      # (1, 3*HP)
                    whid_ref,     # (HP, H2)   W_hidden.T, rows zero padded
                    bhid_ref,     # (1, H2)
                    wproj_ref,    # (H2, 2)    W_proj.T
                    bproj_ref,    # (1, 2)
                    out_ref,      # (B, 2)
                    *, T, B, HP):
    # One-shot input projection for ALL timesteps (hoisted off the serial path):
    # M = T*B instead of B per step, and it is computed only once.
    gi_all = (jnp.dot(emb_ref[...], wih_ref[...],
                      preferred_element_type=jnp.float32)
              + bih_ref[...])                                  # (T*B, 3*HP)

    whh = whh_ref[...]                                         # resident across loop
    bhh = bhh_ref[...]

    h = jnp.zeros((B, HP), jnp.float32)                        # padded lanes stay 0
    # T is tiny and static: trace-time unrolled loop; only ONE small MXU dot on
    # the serial dependency chain per timestep.
    for t in range(T):
        gi = gi_all[t * B:(t + 1) * B, :]                      # static slice (B, 3*HP)
        gh = jnp.dot(h, whh, preferred_element_type=jnp.float32) + bhh

        # 128-lane aligned gate slices -> free vreg views.
        i_r, i_z, i_n = gi[:, 0:HP], gi[:, HP:2 * HP], gi[:, 2 * HP:3 * HP]
        h_r, h_z, h_n = gh[:, 0:HP], gh[:, HP:2 * HP], gh[:, 2 * HP:3 * HP]

        r = jax.nn.sigmoid(i_r + h_r)
        z = jax.nn.sigmoid(i_z + h_z)
        n = jnp.tanh(i_n + r * h_n)        # PyTorch GRU: r gates (W_hn h + b_hn)
        h = (1.0 - z) * n + z * h          # padded lanes remain exactly 0

    # One-shot head: Linear -> ReLU -> proj (padded rows of whid are zero, so
    # padded hidden lanes contribute nothing).
    hid = jnp.maximum(jnp.dot(h, whid_ref[...],
                              preferred_element_type=jnp.float32)
                      + bhid_ref[...], 0.0)
    out_ref[...] = (jnp.dot(hid, wproj_ref[...],
                            preferred_element_type=jnp.float32)
                    + bproj_ref[...])


# ------------------------------ wrapper --------------------------------------
def _pad_gate_cols(w, H, HP):
    """(rows, 3H) -> (rows, 3*HP): each gate block zero-padded to HP lanes."""
    rows = w.shape[0]
    w3 = w.reshape(rows, 3, H)
    w3p = jnp.pad(w3, ((0, 0), (0, 0), (0, HP - H)))
    return w3p.reshape(rows, 3 * HP)


def gru_forward_pallas(inp, params):
    """inp: (B, T) int32 token ids.  Returns (1, B, 2) like the PyTorch module."""
    B, T = inp.shape
    E = params["embed"].shape[1]
    H = params["whh"].shape[1]
    H2 = params["whid"].shape[0]
    HP = ((H + 127) // 128) * 128       # per-gate width padded to full 128 lanes

    # Embedding lookup (plain-JAX glue), then time-major flat layout (T*B, E).
    emb = params["embed"][inp]                                  # (B, T, E)
    emb_tm = jnp.transpose(emb, (1, 0, 2)).reshape(T * B, E)    # (T*B, E)

    # Gate-padded, transposed weights.
    wih_p = _pad_gate_cols(params["wih"].T, H, HP)              # (E, 3*HP)
    bih_p = _pad_gate_cols(params["bih"].reshape(1, 3 * H), H, HP)
    whh_p = jnp.zeros((HP, 3 * HP), jnp.float32).at[:H].set(
        _pad_gate_cols(params["whh"].T, H, HP))                 # (HP, 3*HP)
    bhh_p = _pad_gate_cols(params["bhh"].reshape(1, 3 * H), H, HP)
    whid_p = jnp.zeros((HP, H2), jnp.float32).at[:H].set(params["whid"].T)
    bhid = params["bhid"].reshape(1, H2)
    wproj_t = params["wproj"].T                                 # (H2, 2)
    bproj = params["bproj"].reshape(1, 2)

    kernel = functools.partial(gru_head_kernel, T=T, B=B, HP=HP)
    # Single invocation (no grid): every operand is a whole-array VMEM-resident
    # block; total footprint is a few KiB on all of v5e/v6e/v7x.
    out = pl.pallas_call(
        kernel,
        out_shape=jax.ShapeDtypeStruct((B, 2), jnp.float32),
    )(emb_tm, wih_p, bih_p, whh_p, bhh_p, whid_p, bhid, wproj_t, bproj)

    return out[None, :, :]                                      # (1, B, 2)


# --------------------------- pure-JAX reference ------------------------------
def gru_forward_ref(inp, params):
    emb = params["embed"][inp]                                  # (B, T, E)
    B = inp.shape[0]
    H = params["whh"].shape[1]

    def step(h, x):
        gi = x @ params["wih"].T + params["bih"]
        gh = h @ params["whh"].T + params["bhh"]
        i_r, i_z, i_n = jnp.split(gi, 3, axis=-1)
        h_r, h_z, h_n = jnp.split(gh, 3, axis=-1)
        r = jax.nn.sigmoid(i_r + h_r)
        z = jax.nn.sigmoid(i_z + h_z)
        n = jnp.tanh(i_n + r * h_n)
        h_new = (1.0 - z) * n + z * h
        return h_new, None

    h0 = jnp.zeros((B, H), jnp.float32)
    h_last, _ = lax.scan(step, h0, jnp.transpose(emb, (1, 0, 2)))
    hid = jnp.maximum(h_last @ params["whid"].T + params["bhid"], 0.0)
    return (hid @ params["wproj"].T + params["bproj"])[None, :, :]


# --------------------------------- main --------------------------------------
if __name__ == "__main__":
    vocab_size, emb_size, hidden_size, hidden_size2 = 16, 32, 32, 32
    B, T = 2, 8

    key = jax.random.PRNGKey(0)
    ks = jax.random.split(key, 10)
    s = 0.1
    params = {
        "embed": (s * jax.random.normal(ks[0], (vocab_size, emb_size))).astype(jnp.float32),
        "wih":   (s * jax.random.normal(ks[1], (3 * hidden_size, emb_size))).astype(jnp.float32),
        "whh":   (s * jax.random.normal(ks[2], (3 * hidden_size, hidden_size))).astype(jnp.float32),
        "bih":   (s * jax.random.normal(ks[3], (3 * hidden_size,))).astype(jnp.float32),
        "bhh":   (s * jax.random.normal(ks[4], (3 * hidden_size,))).astype(jnp.float32),
        "whid":  (s * jax.random.normal(ks[5], (hidden_size2, hidden_size))).astype(jnp.float32),
        "bhid":  (s * jax.random.normal(ks[6], (hidden_size2,))).astype(jnp.float32),
        "wproj": (s * jax.random.normal(ks[7], (2, hidden_size2))).astype(jnp.float32),
        "bproj": (s * jax.random.normal(ks[8], (2,))).astype(jnp.float32),
    }
    inp = jax.random.randint(ks[9], (B, T), 0, vocab_size, dtype=jnp.int32)

    forward = jax.jit(gru_forward_pallas)
    out = jax.block_until_ready(forward(inp, params))
    ref = jax.block_until_ready(gru_forward_ref(inp, params))

    assert out.shape == (1, B, 2), out.shape
    np.testing.assert_allclose(np.asarray(out), np.asarray(ref), rtol=1e-3, atol=1e-3)
    print("KERNEL_OK")
</pallas_src>

<mosaic_0001>
module attributes {stable_mosaic.version = 11 : i64} {
  func.func @gru_head_kernel(%arg0: memref<16x32xf32, #tpu.memory_space<vmem>>, %arg1: memref<32x384xf32, #tpu.memory_space<vmem>>, %arg2: memref<1x384xf32, #tpu.memory_space<vmem>>, %arg3: memref<128x384xf32, #tpu.memory_space<vmem>>, %arg4: memref<1x384xf32, #tpu.memory_space<vmem>>, %arg5: memref<128x32xf32, #tpu.memory_space<vmem>>, %arg6: memref<1x32xf32, #tpu.memory_space<vmem>>, %arg7: memref<32x2xf32, #tpu.memory_space<vmem>>, %arg8: memref<1x2xf32, #tpu.memory_space<vmem>>, %arg9: memref<2x2xf32, #tpu.memory_space<vmem>>) attributes {dimension_semantics = [], scalar_prefetch = 0 : i64, scratch_operands = 0 : i64, tpu.core_type = #tpu.core_type<tc>} {
    %c0 = arith.constant 0 : index
    %c0_0 = arith.constant 0 : index
    %0 = vector.load %arg0[%c0, %c0_0] : memref<16x32xf32, #tpu.memory_space<vmem>>, vector<16x32xf32>
    %c0_1 = arith.constant 0 : index
    %c0_2 = arith.constant 0 : index
    %1 = vector.load %arg1[%c0_1, %c0_2] : memref<32x384xf32, #tpu.memory_space<vmem>>, vector<32x384xf32>
    %cst = arith.constant dense<0.000000e+00> : vector<16x384xf32>
    %2 = tpu.matmul %0, %1, %cst {dimension_numbers = #tpu.dot_dimension_numbers<[1], [0], [0], [1], [0, 0, 1, 1], [], []>} : vector<16x32xf32>, vector<32x384xf32>, vector<16x384xf32> -> vector<16x384xf32>
    %c0_3 = arith.constant 0 : index
    %c0_4 = arith.constant 0 : index
    %3 = vector.load %arg2[%c0_3, %c0_4] : memref<1x384xf32, #tpu.memory_space<vmem>>, vector<1x384xf32>
    %4 = vector.broadcast %3 : vector<1x384xf32> to vector<16x384xf32>
    %5 = arith.addf %2, %4 : vector<16x384xf32>
    %c0_5 = arith.constant 0 : index
    %c0_6 = arith.constant 0 : index
    %6 = vector.load %arg3[%c0_5, %c0_6] : memref<128x384xf32, #tpu.memory_space<vmem>>, vector<128x384xf32>
    %c0_7 = arith.constant 0 : index
    %c0_8 = arith.constant 0 : index
    %7 = vector.load %arg4[%c0_7, %c0_8] : memref<1x384xf32, #tpu.memory_space<vmem>>, vector<1x384xf32>
    %cst_9 = arith.constant 0.000000e+00 : f32
    %8 = vector.broadcast %cst_9 : f32 to vector<2x128xf32>
    %9 = vector.extract_strided_slice %5 {offsets = [0, 0], sizes = [2, 384], strides = [1, 1]} : vector<16x384xf32> to vector<2x384xf32>
    %cst_10 = arith.constant dense<0.000000e+00> : vector<2x384xf32>
    %10 = tpu.matmul %8, %6, %cst_10 {dimension_numbers = #tpu.dot_dimension_numbers<[1], [0], [0], [1], [0, 0, 1, 1], [], []>} : vector<2x128xf32>, vector<128x384xf32>, vector<2x384xf32> -> vector<2x384xf32>
    %11 = vector.broadcast %7 : vector<1x384xf32> to vector<2x384xf32>
    %12 = arith.addf %10, %11 : vector<2x384xf32>
    %13 = vector.extract_strided_slice %9 {offsets = [0, 0], sizes = [2, 128], strides = [1, 1]} : vector<2x384xf32> to vector<2x128xf32>
    %14 = vector.extract_strided_slice %9 {offsets = [0, 128], sizes = [2, 128], strides = [1, 1]} : vector<2x384xf32> to vector<2x128xf32>
    %15 = vector.extract_strided_slice %9 {offsets = [0, 256], sizes = [2, 128], strides = [1, 1]} : vector<2x384xf32> to vector<2x128xf32>
    %16 = vector.extract_strided_slice %12 {offsets = [0, 0], sizes = [2, 128], strides = [1, 1]} : vector<2x384xf32> to vector<2x128xf32>
    %17 = vector.extract_strided_slice %12 {offsets = [0, 128], sizes = [2, 128], strides = [1, 1]} : vector<2x384xf32> to vector<2x128xf32>
    %18 = vector.extract_strided_slice %12 {offsets = [0, 256], sizes = [2, 128], strides = [1, 1]} : vector<2x384xf32> to vector<2x128xf32>
    %19 = arith.addf %13, %16 : vector<2x128xf32>
    %20 = arith.negf %19 : vector<2x128xf32>
    %21 = math.exp %20 : vector<2x128xf32>
    %cst_11 = arith.constant 1.000000e+00 : f32
    %22 = vector.broadcast %cst_11 : f32 to vector<2x128xf32>
    %23 = arith.addf %22, %21 : vector<2x128xf32>
    %24 = arith.divf %22, %23 : vector<2x128xf32>
    %25 = arith.addf %14, %17 : vector<2x128xf32>
    %26 = arith.negf %25 : vector<2x128xf32>
    %27 = math.exp %26 : vector<2x128xf32>
    %cst_12 = arith.constant 1.000000e+00 : f32
    %28 = vector.broadcast %cst_12 : f32 to vector<2x128xf32>
    %29 = arith.addf %28, %27 : vector<2x128xf32>
    %30 = arith.divf %28, %29 : vector<2x128xf32>
    %31 = arith.mulf %24, %18 : vector<2x128xf32>
    %32 = arith.addf %15, %31 : vector<2x128xf32>
    %33 = math.tanh %32 : vector<2x128xf32>
    %cst_13 = arith.constant 1.000000e+00 : f32
    %34 = vector.broadcast %cst_13 : f32 to vector<2x128xf32>
    %35 = arith.subf %34, %30 : vector<2x128xf32>
    %36 = arith.mulf %35, %33 : vector<2x128xf32>
    %37 = arith.mulf %30, %8 : vector<2x128xf32>
    %38 = arith.addf %36, %37 : vector<2x128xf32>
    %39 = vector.extract_strided_slice %5 {offsets = [2, 0], sizes = [2, 384], strides = [1, 1]} : vector<16x384xf32> to vector<2x384xf32>
    %cst_14 = arith.constant dense<0.000000e+00> : vector<2x384xf32>
    %40 = tpu.matmul %38, %6, %cst_14 {dimension_numbers = #tpu.dot_dimension_numbers<[1], [0], [0], [1], [0, 0, 1, 1], [], []>} : vector<2x128xf32>, vector<128x384xf32>, vector<2x384xf32> -> vector<2x384xf32>
    %41 = vector.broadcast %7 : vector<1x384xf32> to vector<2x384xf32>
    %42 = arith.addf %40, %41 : vector<2x384xf32>
    %43 = vector.extract_strided_slice %39 {offsets = [0, 0], sizes = [2, 128], strides = [1, 1]} : vector<2x384xf32> to vector<2x128xf32>
    %44 = vector.extract_strided_slice %39 {offsets = [0, 128], sizes = [2, 128], strides = [1, 1]} : vector<2x384xf32> to vector<2x128xf32>
    %45 = vector.extract_strided_slice %39 {offsets = [0, 256], sizes = [2, 128], strides = [1, 1]} : vector<2x384xf32> to vector<2x128xf32>
    %46 = vector.extract_strided_slice %42 {offsets = [0, 0], sizes = [2, 128], strides = [1, 1]} : vector<2x384xf32> to vector<2x128xf32>
    %47 = vector.extract_strided_slice %42 {offsets = [0, 128], sizes = [2, 128], strides = [1, 1]} : vector<2x384xf32> to vector<2x128xf32>
    %48 = vector.extract_strided_slice %42 {offsets = [0, 256], sizes = [2, 128], strides = [1, 1]} : vector<2x384xf32> to vector<2x128xf32>
    %49 = arith.addf %43, %46 : vector<2x128xf32>
    %50 = arith.negf %49 : vector<2x128xf32>
    %51 = math.exp %50 : vector<2x128xf32>
    %cst_15 = arith.constant 1.000000e+00 : f32
    %52 = vector.broadcast %cst_15 : f32 to vector<2x128xf32>
    %53 = arith.addf %52, %51 : vector<2x128xf32>
    %54 = arith.divf %52, %53 : vector<2x128xf32>
    %55 = arith.addf %44, %47 : vector<2x128xf32>
    %56 = arith.negf %55 : vector<2x128xf32>
    %57 = math.exp %56 : vector<2x128xf32>
    %cst_16 = arith.constant 1.000000e+00 : f32
    %58 = vector.broadcast %cst_16 : f32 to vector<2x128xf32>
    %59 = arith.addf %58, %57 : vector<2x128xf32>
    %60 = arith.divf %58, %59 : vector<2x128xf32>
    %61 = arith.mulf %54, %48 : vector<2x128xf32>
    %62 = arith.addf %45, %61 : vector<2x128xf32>
    %63 = math.tanh %62 : vector<2x128xf32>
    %cst_17 = arith.constant 1.000000e+00 : f32
    %64 = vector.broadcast %cst_17 : f32 to vector<2x128xf32>
    %65 = arith.subf %64, %60 : vector<2x128xf32>
    %66 = arith.mulf %65, %63 : vector<2x128xf32>
    %67 = arith.mulf %60, %38 : vector<2x128xf32>
    %68 = arith.addf %66, %67 : vector<2x128xf32>
    %69 = vector.extract_strided_slice %5 {offsets = [4, 0], sizes = [2, 384], strides = [1, 1]} : vector<16x384xf32> to vector<2x384xf32>
    %cst_18 = arith.constant dense<0.000000e+00> : vector<2x384xf32>
    %70 = tpu.matmul %68, %6, %cst_18 {dimension_numbers = #tpu.dot_dimension_numbers<[1], [0], [0], [1], [0, 0, 1, 1], [], []>} : vector<2x128xf32>, vector<128x384xf32>, vector<2x384xf32> -> vector<2x384xf32>
    %71 = vector.broadcast %7 : vector<1x384xf32> to vector<2x384xf32>
    %72 = arith.addf %70, %71 : vector<2x384xf32>
    %73 = vector.extract_strided_slice %69 {offsets = [0, 0], sizes = [2, 128], strides = [1, 1]} : vector<2x384xf32> to vector<2x128xf32>
    %74 = vector.extract_strided_slice %69 {offsets = [0, 128], sizes = [2, 128], strides = [1, 1]} : vector<2x384xf32> to vector<2x128xf32>
    %75 = vector.extract_strided_slice %69 {offsets = [0, 256], sizes = [2, 128], strides = [1, 1]} : vector<2x384xf32> to vector<2x128xf32>
    %76 = vector.extract_strided_slice %72 {offsets = [0, 0], sizes = [2, 128], strides = [1, 1]} : vector<2x384xf32> to vector<2x128xf32>
    %77 = vector.extract_strided_slice %72 {offsets = [0, 128], sizes = [2, 128], strides = [1, 1]} : vector<2x384xf32> to vector<2x128xf32>
    %78 = vector.extract_strided_slice %72 {offsets = [0, 256], sizes = [2, 128], strides = [1, 1]} : vector<2x384xf32> to vector<2x128xf32>
    %79 = arith.addf %73, %76 : vector<2x128xf32>
    %80 = arith.negf %79 : vector<2x128xf32>
    %81 = math.exp %80 : vector<2x128xf32>
    %cst_19 = arith.constant 1.000000e+00 : f32
    %82 = vector.broadcast %cst_19 : f32 to vector<2x128xf32>
    %83 = arith.addf %82, %81 : vector<2x128xf32>
    %84 = arith.divf %82, %83 : vector<2x128xf32>
    %85 = arith.addf %74, %77 : vector<2x128xf32>
    %86 = arith.negf %85 : vector<2x128xf32>
    %87 = math.exp %86 : vector<2x128xf32>
    %cst_20 = arith.constant 1.000000e+00 : f32
    %88 = vector.broadcast %cst_20 : f32 to vector<2x128xf32>
    %89 = arith.addf %88, %87 : vector<2x128xf32>
    %90 = arith.divf %88, %89 : vector<2x128xf32>
    %91 = arith.mulf %84, %78 : vector<2x128xf32>
    %92 = arith.addf %75, %91 : vector<2x128xf32>
    %93 = math.tanh %92 : vector<2x128xf32>
    %cst_21 = arith.constant 1.000000e+00 : f32
    %94 = vector.broadcast %cst_21 : f32 to vector<2x128xf32>
    %95 = arith.subf %94, %90 : vector<2x128xf32>
    %96 = arith.mulf %95, %93 : vector<2x128xf32>
    %97 = arith.mulf %90, %68 : vector<2x128xf32>
    %98 = arith.addf %96, %97 : vector<2x128xf32>
    %99 = vector.extract_strided_slice %5 {offsets = [6, 0], sizes = [2, 384], strides = [1, 1]} : vector<16x384xf32> to vector<2x384xf32>
    %cst_22 = arith.constant dense<0.000000e+00> : vector<2x384xf32>
    %100 = tpu.matmul %98, %6, %cst_22 {dimension_numbers = #tpu.dot_dimension_numbers<[1], [0], [0], [1], [0, 0, 1, 1], [], []>} : vector<2x128xf32>, vector<128x384xf32>, vector<2x384xf32> -> vector<2x384xf32>
    %101 = vector.broadcast %7 : vector<1x384xf32> to vector<2x384xf32>
    %102 = arith.addf %100, %101 : vector<2x384xf32>
    %103 = vector.extract_strided_slice %99 {offsets = [0, 0], sizes = [2, 128], strides = [1, 1]} : vector<2x384xf32> to vector<2x128xf32>
    %104 = vector.extract_strided_slice %99 {offsets = [0, 128], sizes = [2, 128], strides = [1, 1]} : vector<2x384xf32> to vector<2x128xf32>
    %105 = vector.extract_strided_slice %99 {offsets = [0, 256], sizes = [2, 128], strides = [1, 1]} : vector<2x384xf32> to vector<2x128xf32>
    %106 = vector.extract_strided_slice %102 {offsets = [0, 0], sizes = [2, 128], strides = [1, 1]} : vector<2x384xf32> to vector<2x128xf32>
    %107 = vector.extract_strided_slice %102 {offsets = [0, 128], sizes = [2, 128], strides = [1, 1]} : vector<2x384xf32> to vector<2x128xf32>
    %108 = vector.extract_strided_slice %102 {offsets = [0, 256], sizes = [2, 128], strides = [1, 1]} : vector<2x384xf32> to vector<2x128xf32>
    %109 = arith.addf %103, %106 : vector<2x128xf32>
    %110 = arith.negf %109 : vector<2x128xf32>
    %111 = math.exp %110 : vector<2x128xf32>
    %cst_23 = arith.constant 1.000000e+00 : f32
    %112 = vector.broadcast %cst_23 : f32 to vector<2x128xf32>
    %113 = arith.addf %112, %111 : vector<2x128xf32>
    %114 = arith.divf %112, %113 : vector<2x128xf32>
    %115 = arith.addf %104, %107 : vector<2x128xf32>
    %116 = arith.negf %115 : vector<2x128xf32>
    %117 = math.exp %116 : vector<2x128xf32>
    %cst_24 = arith.constant 1.000000e+00 : f32
    %118 = vector.broadcast %cst_24 : f32 to vector<2x128xf32>
    %119 = arith.addf %118, %117 : vector<2x128xf32>
    %120 = arith.divf %118, %119 : vector<2x128xf32>
    %121 = arith.mulf %114, %108 : vector<2x128xf32>
    %122 = arith.addf %105, %121 : vector<2x128xf32>
    %123 = math.tanh %122 : vector<2x128xf32>
    %cst_25 = arith.constant 1.000000e+00 : f32
    %124 = vector.broadcast %cst_25 : f32 to vector<2x128xf32>
    %125 = arith.subf %124, %120 : vector<2x128xf32>
    %126 = arith.mulf %125, %123 : vector<2x128xf32>
    %127 = arith.mulf %120, %98 : vector<2x128xf32>
    %128 = arith.addf %126, %127 : vector<2x128xf32>
    %129 = vector.extract_strided_slice %5 {offsets = [8, 0], sizes = [2, 384], strides = [1, 1]} : vector<16x384xf32> to vector<2x384xf32>
    %cst_26 = arith.constant dense<0.000000e+00> : vector<2x384xf32>
    %130 = tpu.matmul %128, %6, %cst_26 {dimension_numbers = #tpu.dot_dimension_numbers<[1], [0], [0], [1], [0, 0, 1, 1], [], []>} : vector<2x128xf32>, vector<128x384xf32>, vector<2x384xf32> -> vector<2x384xf32>
    %131 = vector.broadcast %7 : vector<1x384xf32> to vector<2x384xf32>
    %132 = arith.addf %130, %131 : vector<2x384xf32>
    %133 = vector.extract_strided_slice %129 {offsets = [0, 0], sizes = [2, 128], strides = [1, 1]} : vector<2x384xf32> to vector<2x128xf32>
    %134 = vector.extract_strided_slice %129 {offsets = [0, 128], sizes = [2, 128], strides = [1, 1]} : vector<2x384xf32> to vector<2x128xf32>
    %135 = vector.extract_strided_slice %129 {offsets = [0, 256], sizes = [2, 128], strides = [1, 1]} : vector<2x384xf32> to vector<2x128xf32>
    %136 = vector.extract_strided_slice %132 {offsets = [0, 0], sizes = [2, 128], strides = [1, 1]} : vector<2x384xf32> to vector<2x128xf32>
    %137 = vector.extract_strided_slice %132 {offsets = [0, 128], sizes = [2, 128], strides = [1, 1]} : vector<2x384xf32> to vector<2x128xf32>
    %138 = vector.extract_strided_slice %132 {offsets = [0, 256], sizes = [2, 128], strides = [1, 1]} : vector<2x384xf32> to vector<2x128xf32>
    %139 = arith.addf %133, %136 : vector<2x128xf32>
    %140 = arith.negf %139 : vector<2x128xf32>
    %141 = math.exp %140 : vector<2x128xf32>
    %cst_27 = arith.constant 1.000000e+00 : f32
    %142 = vector.broadcast %cst_27 : f32 to vector<2x128xf32>
    %143 = arith.addf %142, %141 : vector<2x128xf32>
    %144 = arith.divf %142, %143 : vector<2x128xf32>
    %145 = arith.addf %134, %137 : vector<2x128xf32>
    %146 = arith.negf %145 : vector<2x128xf32>
    %147 = math.exp %146 : vector<2x128xf32>
    %cst_28 = arith.constant 1.000000e+00 : f32
    %148 = vector.broadcast %cst_28 : f32 to vector<2x128xf32>
    %149 = arith.addf %148, %147 : vector<2x128xf32>
    %150 = arith.divf %148, %149 : vector<2x128xf32>
    %151 = arith.mulf %144, %138 : vector<2x128xf32>
    %152 = arith.addf %135, %151 : vector<2x128xf32>
    %153 = math.tanh %152 : vector<2x128xf32>
    %cst_29 = arith.constant 1.000000e+00 : f32
    %154 = vector.broadcast %cst_29 : f32 to vector<2x128xf32>
    %155 = arith.subf %154, %150 : vector<2x128xf32>
    %156 = arith.mulf %155, %153 : vector<2x128xf32>
    %157 = arith.mulf %150, %128 : vector<2x128xf32>
    %158 = arith.addf %156, %157 : vector<2x128xf32>
    %159 = vector.extract_strided_slice %5 {offsets = [10, 0], sizes = [2, 384], strides = [1, 1]} : vector<16x384xf32> to vector<2x384xf32>
    %cst_30 = arith.constant dense<0.000000e+00> : vector<2x384xf32>
    %160 = tpu.matmul %158, %6, %cst_30 {dimension_numbers = #tpu.dot_dimension_numbers<[1], [0], [0], [1], [0, 0, 1, 1], [], []>} : vector<2x128xf32>, vector<128x384xf32>, vector<2x384xf32> -> vector<2x384xf32>
    %161 = vector.broadcast %7 : vector<1x384xf32> to vector<2x384xf32>
    %162 = arith.addf %160, %161 : vector<2x384xf32>
    %163 = vector.extract_strided_slice %159 {offsets = [0, 0], sizes = [2, 128], strides = [1, 1]} : vector<2x384xf32> to vector<2x128xf32>
    %164 = vector.extract_strided_slice %159 {offsets = [0, 128], sizes = [2, 128], strides = [1, 1]} : vector<2x384xf32> to vector<2x128xf32>
    %165 = vector.extract_strided_slice %159 {offsets = [0, 256], sizes = [2, 128], strides = [1, 1]} : vector<2x384xf32> to vector<2x128xf32>
    %166 = vector.extract_strided_slice %162 {offsets = [0, 0], sizes = [2, 128], strides = [1, 1]} : vector<2x384xf32> to vector<2x128xf32>
    %167 = vector.extract_strided_slice %162 {offsets = [0, 128], sizes = [2, 128], strides = [1, 1]} : vector<2x384xf32> to vector<2x128xf32>
    %168 = vector.extract_strided_slice %162 {offsets = [0, 256], sizes = [2, 128], strides = [1, 1]} : vector<2x384xf32> to vector<2x128xf32>
    %169 = arith.addf %163, %166 : vector<2x128xf32>
    %170 = arith.negf %169 : vector<2x128xf32>
    %171 = math.exp %170 : vector<2x128xf32>
    %cst_31 = arith.constant 1.000000e+00 : f32
    %172 = vector.broadcast %cst_31 : f32 to vector<2x128xf32>
    %173 = arith.addf %172, %171 : vector<2x128xf32>
    %174 = arith.divf %172, %173 : vector<2x128xf32>
    %175 = arith.addf %164, %167 : vector<2x128xf32>
    %176 = arith.negf %175 : vector<2x128xf32>
    %177 = math.exp %176 : vector<2x128xf32>
    %cst_32 = arith.constant 1.000000e+00 : f32
    %178 = vector.broadcast %cst_32 : f32 to vector<2x128xf32>
    %179 = arith.addf %178, %177 : vector<2x128xf32>
    %180 = arith.divf %178, %179 : vector<2x128xf32>
    %181 = arith.mulf %174, %168 : vector<2x128xf32>
    %182 = arith.addf %165, %181 : vector<2x128xf32>
    %183 = math.tanh %182 : vector<2x128xf32>
    %cst_33 = arith.constant 1.000000e+00 : f32
    %184 = vector.broadcast %cst_33 : f32 to vector<2x128xf32>
    %185 = arith.subf %184, %180 : vector<2x128xf32>
    %186 = arith.mulf %185, %183 : vector<2x128xf32>
    %187 = arith.mulf %180, %158 : vector<2x128xf32>
    %188 = arith.addf %186, %187 : vector<2x128xf32>
    %189 = vector.extract_strided_slice %5 {offsets = [12, 0], sizes = [2, 384], strides = [1, 1]} : vector<16x384xf32> to vector<2x384xf32>
    %cst_34 = arith.constant dense<0.000000e+00> : vector<2x384xf32>
    %190 = tpu.matmul %188, %6, %cst_34 {dimension_numbers = #tpu.dot_dimension_numbers<[1], [0], [0], [1], [0, 0, 1, 1], [], []>} : vector<2x128xf32>, vector<128x384xf32>, vector<2x384xf32> -> vector<2x384xf32>
    %191 = vector.broadcast %7 : vector<1x384xf32> to vector<2x384xf32>
    %192 = arith.addf %190, %191 : vector<2x384xf32>
    %193 = vector.extract_strided_slice %189 {offsets = [0, 0], sizes = [2, 128], strides = [1, 1]} : vector<2x384xf32> to vector<2x128xf32>
    %194 = vector.extract_strided_slice %189 {offsets = [0, 128], sizes = [2, 128], strides = [1, 1]} : vector<2x384xf32> to vector<2x128xf32>
    %195 = vector.extract_strided_slice %189 {offsets = [0, 256], sizes = [2, 128], strides = [1, 1]} : vector<2x384xf32> to vector<2x128xf32>
    %196 = vector.extract_strided_slice %192 {offsets = [0, 0], sizes = [2, 128], strides = [1, 1]} : vector<2x384xf32> to vector<2x128xf32>
    %197 = vector.extract_strided_slice %192 {offsets = [0, 128], sizes = [2, 128], strides = [1, 1]} : vector<2x384xf32> to vector<2x128xf32>
    %198 = vector.extract_strided_slice %192 {offsets = [0, 256], sizes = [2, 128], strides = [1, 1]} : vector<2x384xf32> to vector<2x128xf32>
    %199 = arith.addf %193, %196 : vector<2x128xf32>
    %200 = arith.negf %199 : vector<2x128xf32>
    %201 = math.exp %200 : vector<2x128xf32>
    %cst_35 = arith.constant 1.000000e+00 : f32
    %202 = vector.broadcast %cst_35 : f32 to vector<2x128xf32>
    %203 = arith.addf %202, %201 : vector<2x128xf32>
    %204 = arith.divf %202, %203 : vector<2x128xf32>
    %205 = arith.addf %194, %197 : vector<2x128xf32>
    %206 = arith.negf %205 : vector<2x128xf32>
    %207 = math.exp %206 : vector<2x128xf32>
    %cst_36 = arith.constant 1.000000e+00 : f32
    %208 = vector.broadcast %cst_36 : f32 to vector<2x128xf32>
    %209 = arith.addf %208, %207 : vector<2x128xf32>
    %210 = arith.divf %208, %209 : vector<2x128xf32>
    %211 = arith.mulf %204, %198 : vector<2x128xf32>
    %212 = arith.addf %195, %211 : vector<2x128xf32>
    %213 = math.tanh %212 : vector<2x128xf32>
    %cst_37 = arith.constant 1.000000e+00 : f32
    %214 = vector.broadcast %cst_37 : f32 to vector<2x128xf32>
    %215 = arith.subf %214, %210 : vector<2x128xf32>
    %216 = arith.mulf %215, %213 : vector<2x128xf32>
    %217 = arith.mulf %210, %188 : vector<2x128xf32>
    %218 = arith.addf %216, %217 : vector<2x128xf32>
    %219 = vector.extract_strided_slice %5 {offsets = [14, 0], sizes = [2, 384], strides = [1, 1]} : vector<16x384xf32> to vector<2x384xf32>
    %cst_38 = arith.constant dense<0.000000e+00> : vector<2x384xf32>
    %220 = tpu.matmul %218, %6, %cst_38 {dimension_numbers = #tpu.dot_dimension_numbers<[1], [0], [0], [1], [0, 0, 1, 1], [], []>} : vector<2x128xf32>, vector<128x384xf32>, vector<2x384xf32> -> vector<2x384xf32>
    %221 = vector.broadcast %7 : vector<1x384xf32> to vector<2x384xf32>
    %222 = arith.addf %220, %221 : vector<2x384xf32>
    %223 = vector.extract_strided_slice %219 {offsets = [0, 0], sizes = [2, 128], strides = [1, 1]} : vector<2x384xf32> to vector<2x128xf32>
    %224 = vector.extract_strided_slice %219 {offsets = [0, 128], sizes = [2, 128], strides = [1, 1]} : vector<2x384xf32> to vector<2x128xf32>
    %225 = vector.extract_strided_slice %219 {offsets = [0, 256], sizes = [2, 128], strides = [1, 1]} : vector<2x384xf32> to vector<2x128xf32>
    %226 = vector.extract_strided_slice %222 {offsets = [0, 0], sizes = [2, 128], strides = [1, 1]} : vector<2x384xf32> to vector<2x128xf32>
    %227 = vector.extract_strided_slice %222 {offsets = [0, 128], sizes = [2, 128], strides = [1, 1]} : vector<2x384xf32> to vector<2x128xf32>
    %228 = vector.extract_strided_slice %222 {offsets = [0, 256], sizes = [2, 128], strides = [1, 1]} : vector<2x384xf32> to vector<2x128xf32>
    %229 = arith.addf %223, %226 : vector<2x128xf32>
    %230 = arith.negf %229 : vector<2x128xf32>
    %231 = math.exp %230 : vector<2x128xf32>
    %cst_39 = arith.constant 1.000000e+00 : f32
    %232 = vector.broadcast %cst_39 : f32 to vector<2x128xf32>
    %233 = arith.addf %232, %231 : vector<2x128xf32>
    %234 = arith.divf %232, %233 : vector<2x128xf32>
    %235 = arith.addf %224, %227 : vector<2x128xf32>
    %236 = arith.negf %235 : vector<2x128xf32>
    %237 = math.exp %236 : vector<2x128xf32>
    %cst_40 = arith.constant 1.000000e+00 : f32
    %238 = vector.broadcast %cst_40 : f32 to vector<2x128xf32>
    %239 = arith.addf %238, %237 : vector<2x128xf32>
    %240 = arith.divf %238, %239 : vector<2x128xf32>
    %241 = arith.mulf %234, %228 : vector<2x128xf32>
    %242 = arith.addf %225, %241 : vector<2x128xf32>
    %243 = math.tanh %242 : vector<2x128xf32>
    %cst_41 = arith.constant 1.000000e+00 : f32
    %244 = vector.broadcast %cst_41 : f32 to vector<2x128xf32>
    %245 = arith.subf %244, %240 : vector<2x128xf32>
    %246 = arith.mulf %245, %243 : vector<2x128xf32>
    %247 = arith.mulf %240, %218 : vector<2x128xf32>
    %248 = arith.addf %246, %247 : vector<2x128xf32>
    %c0_42 = arith.constant 0 : index
    %c0_43 = arith.constant 0 : index
    %249 = vector.load %arg5[%c0_42, %c0_43] : memref<128x32xf32, #tpu.memory_space<vmem>>, vector<128x32xf32>
    %cst_44 = arith.constant dense<0.000000e+00> : vector<2x32xf32>
    %250 = tpu.matmul %248, %249, %cst_44 {dimension_numbers = #tpu.dot_dimension_numbers<[1], [0], [0], [1], [0, 0, 1, 1], [], []>} : vector<2x128xf32>, vector<128x32xf32>, vector<2x32xf32> -> vector<2x32xf32>
    %c0_45 = arith.constant 0 : index
    %c0_46 = arith.constant 0 : index
    %251 = vector.load %arg6[%c0_45, %c0_46] : memref<1x32xf32, #tpu.memory_space<vmem>>, vector<1x32xf32>
    %252 = vector.broadcast %251 : vector<1x32xf32> to vector<2x32xf32>
    %253 = arith.addf %250, %252 : vector<2x32xf32>
    %cst_47 = arith.constant 0.000000e+00 : f32
    %254 = vector.broadcast %cst_47 : f32 to vector<2x32xf32>
    %255 = arith.maximumf %253, %254 : vector<2x32xf32>
    %c0_48 = arith.constant 0 : index
    %c0_49 = arith.constant 0 : index
    %256 = vector.load %arg7[%c0_48, %c0_49] : memref<32x2xf32, #tpu.memory_space<vmem>>, vector<32x2xf32>
    %cst_50 = arith.constant dense<0.000000e+00> : vector<2x2xf32>
    %257 = tpu.matmul %255, %256, %cst_50 {dimension_numbers = #tpu.dot_dimension_numbers<[1], [0], [0], [1], [0, 0, 1, 1], [], []>} : vector<2x32xf32>, vector<32x2xf32>, vector<2x2xf32> -> vector<2x2xf32>
    %c0_51 = arith.constant 0 : index
    %c0_52 = arith.constant 0 : index
    %258 = vector.load %arg8[%c0_51, %c0_52] : memref<1x2xf32, #tpu.memory_space<vmem>>, vector<1x2xf32>
    %259 = vector.broadcast %258 : vector<1x2xf32> to vector<2x2xf32>
    %260 = arith.addf %257, %259 : vector<2x2xf32>
    %c0_53 = arith.constant 0 : index
    %c0_54 = arith.constant 0 : index
    %261 = vector.load %arg9[%c0_53, %c0_54] : memref<2x2xf32, #tpu.memory_space<vmem>>, vector<2x2xf32>
    tpu.vector_store %arg9[%c0_53, %c0_54], %260 {strides = array<i32>} : memref<2x2xf32, #tpu.memory_space<vmem>>, vector<2x2xf32>,
    return
  }
}

</mosaic_0001>

<llo_original>
// kernel: gru_forward_pallas.1
$region0: #{gru_forward_pallas.1}
  #allocation0 [shape = 'u32[]', space=smem, size = 0x4, offset = 0x4, fixed_abs, tag = 'smem constant byte address 0x4 - core index']
  #allocation1 [shape = 'u32[144,128]{1,0:T(1,128)}', space=vmem, size = 0x12000, scoped, tag = 'internal scratch']
  %s0 = inlined_call_operand.vmem [shape: f32[16,32], index: 0, kind: input, shape index: {}]
  %s1 = inlined_call_operand.vmem [shape: f32[32,384], index: 1, kind: input, shape index: {}]
  %s2 = inlined_call_operand.vmem [shape: f32[1,384], index: 2, kind: input, shape index: {}]
  %s3 = inlined_call_operand.vmem [shape: f32[128,384], index: 3, kind: input, shape index: {}]
  %s4 = inlined_call_operand.vmem [shape: f32[1,384], index: 4, kind: input, shape index: {}]
  %s5 = inlined_call_operand.vmem [shape: f32[128,32], index: 5, kind: input, shape index: {}]
  %s6 = inlined_call_operand.vmem [shape: f32[1,32], index: 6, kind: input, shape index: {}]
  %s7 = inlined_call_operand.vmem [shape: f32[32,2], index: 7, kind: input, shape index: {}]
  %s8 = inlined_call_operand.vmem [shape: f32[1,2], index: 8, kind: input, shape index: {}]
  %s9 = inlined_call_operand.hbm [shape: f32[2,2], index: 9, kind: output, shape index: {}]
  %s10 = sld [smem:[#allocation0]]
  $region46: #{gru_forward_pallas.1} parent=0
    _
  %s12 = ssub.s32 1, %s10
  %s13 = scalar_select 0, %s12, %s10
  $region1: #{gru_forward_pallas.1} parent=0
    #allocation2 [shape = 'u8[1024]{0}', space=vmem, size = 0x400, scoped, tag = 'output window, operand 0, single buffered']
    #allocation3 [shape = 's32[1]{0}', space=sflag, size = 0x4, scoped, tag = 'scoped memory for gru_forward_pallas.1']
    %14 = vsyncpa [#allocation3], 0
    // Predicated region
    $region2: #{gru_forward_pallas.1} parent=1 // pred_check
      _
    $region3: #{gru_forward_pallas.1} parent=1 // pred_check_branch
      %16 = sbr.rel (0) target = $region5
    $region4: #{gru_forward_pallas.1} parent=1 // pred_region
      _
    $region5: #{gru_forward_pallas.1} parent=1 // pred_fallthru
      _
    // Predicated region
    $region6: #{gru_forward_pallas.1} parent=1 // pred_check
      _
    $region7: #{gru_forward_pallas.1} parent=1 // pred_check_branch
      %18 = sbr.rel (0) target = $region9
    $region8: #{gru_forward_pallas.1} parent=1 // pred_region
      _
    $region9: #{gru_forward_pallas.1} parent=1 // pred_fallthru
      _
    // Predicated region
    $region10: #{gru_forward_pallas.1} parent=1 // pred_check
      _
    $region11: #{gru_forward_pallas.1} parent=1 // pred_check_branch
      %20 = sbr.rel (0) target = $region13
    $region12: #{gru_forward_pallas.1} parent=1 // pred_region
      _
    $region13: #{gru_forward_pallas.1} parent=1 // pred_fallthru
      _
    // Predicated region
    $region14: #{gru_forward_pallas.1} parent=1 // pred_check
      _
    $region15: #{gru_forward_pallas.1} parent=1 // pred_check_branch
      %22 = sbr.rel (0) target = $region17
    $region16: #{gru_forward_pallas.1} parent=1 // pred_region
      _
    $region17: #{gru_forward_pallas.1} parent=1 // pred_fallthru
      _
    // Predicated region
    $region18: #{gru_forward_pallas.1} parent=1 // pred_check
      _
    $region19: #{gru_forward_pallas.1} parent=1 // pred_check_branch
      %24 = sbr.rel (0) target = $region21
    $region20: #{gru_forward_pallas.1} parent=1 // pred_region
      _
    $region21: #{gru_forward_pallas.1} parent=1 // pred_fallthru
      _
    // Predicated region
    $region22: #{gru_forward_pallas.1} parent=1 // pred_check
      _
    $region23: #{gru_forward_pallas.1} parent=1 // pred_check_branch
      %26 = sbr.rel (0) target = $region25
    $region24: #{gru_forward_pallas.1} parent=1 // pred_region
      _
    $region25: #{gru_forward_pallas.1} parent=1 // pred_fallthru
      _
    // Predicated region
    $region26: #{gru_forward_pallas.1} parent=1 // pred_check
      _
    $region27: #{gru_forward_pallas.1} parent=1 // pred_check_branch
      %28 = sbr.rel (0) target = $region29
    $region28: #{gru_forward_pallas.1} parent=1 // pred_region
      _
    $region29: #{gru_forward_pallas.1} parent=1 // pred_fallthru
      _
    // Predicated region
    $region30: #{gru_forward_pallas.1} parent=1 // pred_check
      _
    $region31: #{gru_forward_pallas.1} parent=1 // pred_check_branch
      %30 = sbr.rel (0) target = $region33
    $region32: #{gru_forward_pallas.1} parent=1 // pred_region
      _
    $region33: #{gru_forward_pallas.1} parent=1 // pred_fallthru
      _
    // Predicated region
    $region34: #{gru_forward_pallas.1} parent=1 // pred_check
      _
    $region35: #{gru_forward_pallas.1} parent=1 // pred_check_branch
      %32 = sbr.rel (0) target = $region37
    $region36: #{gru_forward_pallas.1} parent=1 // pred_region
      _
    $region37: #{gru_forward_pallas.1} parent=1 // pred_fallthru
      _
    %v33 = vld [vmem:[%s0] sm:$0xff]
    %v34 = vld [vmem:[%s0 + $0x8] sm:$0xff]
    %v35 = vld [vmem:[%s1] sm:$0xff]
    %v36 = vld [vmem:[%s1 + $0x8] sm:$0xff]
    %v37 = vld [vmem:[%s1 + $0x10] sm:$0xff]
    %v38 = vld [vmem:[%s1 + $0x18] sm:$0xff]
    %v39 = vld [vmem:[%s1 + $0x20] sm:$0xff]
    %v40 = vld [vmem:[%s1 + $0x28] sm:$0xff]
    %v41 = vld [vmem:[%s1 + $0x30] sm:$0xff]
    %v42 = vld [vmem:[%s1 + $0x38] sm:$0xff]
    %v43 = vld [vmem:[%s1 + $0x40] sm:$0xff]
    %v44 = vld [vmem:[%s1 + $0x48] sm:$0xff]
    %v45 = vld [vmem:[%s1 + $0x50] sm:$0xff]
    %v46 = vld [vmem:[%s1 + $0x58] sm:$0xff]
    %v47 = vld [vmem:[%s2] sm:$0x7]
    %v49 = vlaneseq
    %v50 = vshrl.u32 %v49, 7
    %v51 = vsub.s32 0, %v50
    %v52 = vrot.slane %v47, %v51
    %v53 = vlaneseq
    %v54 = vshrl.u32 %v53, 7
    %v55 = vsub.s32 1, %v54
    %v56 = vrot.slane %v47, %v55
    %v57 = vlaneseq
    %v58 = vshrl.u32 %v57, 7
    %v59 = vsub.s32 2, %v58
    %v60 = vrot.slane %v47, %v59
    %vm64 = vcmask 261120
    %v66 = vsel %vm64, %v33, 0
    %v69 = vsel %vm64, %v34, 0
    %71 = vmatprep.subr.mxu0 %v36
    %72 = vmatpush1.msra.mxu0 %v35
    %73 = vmatprep.subr.mxu0 %v39
    %74 = vmatpush1.msra.mxu0 %v38
    %75 = vmatprep.subr.mxu0 %v42
    %76 = vmatpush1.msra.mxu0 %v41
    %77 = vmatprep.subr.mxu0 %v45
    %78 = vmatpush1.msra.mxu0 %v44
    %79 = vmatprep.subr.mxu0 0.0
    %80 = vmatpush1.msra.mxu0 0.0
    %81 = vmatprep.subr.mxu0 0.0
    %82 = vmatpush1.msra.mxu0 0.0
    %83 = vmatprep.subr.mxu0 0.0
    %84 = vmatpush1.msra.mxu0 0.0
    %85 = vmatprep.subr.mxu0 0.0
    %86 = vmatpush1.msra.mxu0 0.0
    %87 = vmatprep.subr.mxu0 0.0
    %88 = vmatpush1.msra.mxu0 0.0
    %89 = vmatprep.subr.mxu0 0.0
    %90 = vmatpush1.msra.mxu0 0.0
    %91 = vmatprep.subr.mxu0 0.0
    %92 = vmatpush1.msra.mxu0 0.0
    %93 = vmatprep.subr.mxu0 0.0
    %94 = vmatpush1.msra.mxu0 0.0
    %95 = vmatprep.subr.mxu0 0.0
    %96 = vmatpush1.msra.mxu0 0.0
    %97 = vmatprep.subr.mxu0 0.0
    %98 = vmatpush1.msra.mxu0 0.0
    %99 = vmatprep.subr.mxu0 0.0
    %100 = vmatpush1.msra.mxu0 0.0
    %101 = vmatprep.subr.mxu0 0.0
    %102 = vmatpush1.msra.mxu0 0.0
    %103 = vmatprep.subr.mxu0 0.0
    %104 = vmatpush1.msra.mxu0 0.0
    %105 = vmatprep.subr.mxu0 0.0
    %106 = vmatpush1.msra.mxu0 0.0
    %107 = vmatprep.subr.mxu0 0.0
    %108 = vmatpush1.msra.mxu0 0.0
    %109 = vmatprep.subr.mxu0 0.0
    %110 = vmatpush1.msra.mxu0 0.0
    %111 = vmatprep.subr.mxu0 0.0
    %112 = vmatpush1.msra.mxu0 0.0
    %113 = vmatprep.subr.mxu0 0.0
    %114 = vmatpush1.msra.mxu0 0.0
    %115 = vmatprep.subr.mxu0 0.0
    %116 = vmatpush1.msra.mxu0 0.0
    %117 = vmatprep.subr.mxu0 0.0
    %118 = vmatpush1.msra.mxu0 0.0
    %119 = vmatprep.subr.mxu0 0.0
    %120 = vmatpush1.msra.mxu0 0.0
    %121 = vmatprep.subr.mxu0 0.0
    %122 = vmatpush1.msra.mxu0 0.0
    %123 = vmatprep.subr.mxu0 0.0
    %124 = vmatpush1.msra.mxu0 0.0
    %125 = vmatprep.subr.mxu0 0.0
    %126 = vmatpush1.msra.mxu0 0.0
    %127 = vmatprep.subr.mxu0 0.0
    %128 = vmatpush1.msra.mxu0 0.0
    %129 = vmatprep.subr.mxu0 0.0
    %130 = vmatpush1.msra.mxu0 0.0
    %131 = vmatprep.subr.mxu0 0.0
    %132 = vmatpush1.msra.mxu0 0.0
    %133 = vmatprep.subr.mxu0 0.0
    %134 = vmatpush1.msra.mxu0 0.0
    %135 = vmatprep.mubr.f32.mxu0 0.0
    %136 = vmatmul.mubr.f32.gmra.mrb[0].mxu0 %v66
    %v137 = vpop.f32.mrb[0].mxu0
    %v138 = vadd.f32 %v52, %v137
    %v139 = vpop.f32.mrb[0].mxu0
    %v140 = vadd.f32 %v56, %v139
    %141 = vmatprep.mubr.f32.mxu0 0.0
    %142 = vmatmul.mubr.f32.gmra.mrb[0].mxu0 %v69
    %v143 = vpop.f32.mrb[0].mxu0
    %v144 = vadd.f32 %v52, %v143
    %v145 = vpop.f32.mrb[0].mxu0
    %v146 = vadd.f32 %v56, %v145
    %147 = vdwg.mxu0
    %148 = vmatprep.subr.mxu0 0.0
    %149 = vmatpush1.msra.mxu0 %v37
    %150 = vmatprep.subr.mxu0 0.0
    %151 = vmatpush1.msra.mxu0 %v40
    %152 = vmatprep.subr.mxu0 0.0
    %153 = vmatpush1.msra.mxu0 %v43
    %154 = vmatprep.subr.mxu0 0.0
    %155 = vmatpush1.msra.mxu0 %v46
    %156 = vmatprep.subr.mxu0 0.0
    %157 = vmatpush1.msra.mxu0 0.0
    %158 = vmatprep.subr.mxu0 0.0
    %159 = vmatpush1.msra.mxu0 0.0
    %160 = vmatprep.subr.mxu0 0.0
    %161 = vmatpush1.msra.mxu0 0.0
    %162 = vmatprep.subr.mxu0 0.0
    %163 = vmatpush1.msra.mxu0 0.0
    %164 = vmatprep.subr.mxu0 0.0
    %165 = vmatpush1.msra.mxu0 0.0
    %166 = vmatprep.subr.mxu0 0.0
    %167 = vmatpush1.msra.mxu0 0.0
    %168 = vmatprep.subr.mxu0 0.0
    %169 = vmatpush1.msra.mxu0 0.0
    %170 = vmatprep.subr.mxu0 0.0
    %171 = vmatpush1.msra.mxu0 0.0
    %172 = vmatprep.subr.mxu0 0.0
    %173 = vmatpush1.msra.mxu0 0.0
    %174 = vmatprep.subr.mxu0 0.0
    %175 = vmatpush1.msra.mxu0 0.0
    %176 = vmatprep.subr.mxu0 0.0
    %177 = vmatpush1.msra.mxu0 0.0
    %178 = vmatprep.subr.mxu0 0.0
    %179 = vmatpush1.msra.mxu0 0.0
    %180 = vmatprep.subr.mxu0 0.0
    %181 = vmatpush1.msra.mxu0 0.0
    %182 = vmatprep.subr.mxu0 0.0
    %183 = vmatpush1.msra.mxu0 0.0
    %184 = vmatprep.subr.mxu0 0.0
    %185 = vmatpush1.msra.mxu0 0.0
    %186 = vmatprep.subr.mxu0 0.0
    %187 = vmatpush1.msra.mxu0 0.0
    %188 = vmatprep.subr.mxu0 0.0
    %189 = vmatpush1.msra.mxu0 0.0
    %190 = vmatprep.subr.mxu0 0.0
    %191 = vmatpush1.msra.mxu0 0.0
    %192 = vmatprep.subr.mxu0 0.0
    %193 = vmatpush1.msra.mxu0 0.0
    %194 = vmatprep.subr.mxu0 0.0
    %195 = vmatpush1.msra.mxu0 0.0
    %196 = vmatprep.subr.mxu0 0.0
    %197 = vmatpush1.msra.mxu0 0.0
    %198 = vmatprep.subr.mxu0 0.0
    %199 = vmatpush1.msra.mxu0 0.0
    %200 = vmatprep.subr.mxu0 0.0
    %201 = vmatpush1.msra.mxu0 0.0
    %202 = vmatprep.subr.mxu0 0.0
    %203 = vmatpush1.msra.mxu0 0.0
    %204 = vmatprep.subr.mxu0 0.0
    %205 = vmatpush1.msra.mxu0 0.0
    %206 = vmatprep.subr.mxu0 0.0
    %207 = vmatpush1.msra.mxu0 0.0
    %208 = vmatprep.subr.mxu0 0.0
    %209 = vmatpush1.msra.mxu0 0.0
    %210 = vmatprep.subr.mxu0 0.0
    %211 = vmatpush1.msra.mxu0 0.0
    %212 = vmatprep.mubr.f32.mxu0 0.0
    %213 = vmatmul.mubr.f32.gmra.mrb[0].mxu0 %v66
    %v214 = vpop.f32.mrb[0].mxu0
    %v215 = vadd.f32 %v60, %v214
    %v216 = vpop.f32.mrb[0].mxu0
    %217 = vmatprep.mubr.f32.mxu0 0.0
    %218 = vmatmul.mubr.f32.gmra.mrb[0].mxu0 %v69
    %v219 = vpop.f32.mrb[0].mxu0
    %v220 = vadd.f32 %v60, %v219
    %v221 = vpop.f32.mrb[0].mxu0
    %222 = vdwg.mxu0
    %v223 = vld [vmem:[%s3] sm:$0xff]
    %v224 = vld [vmem:[%s3 + $0x8] sm:$0xff]
    %v225 = vld [vmem:[%s3 + $0x10] sm:$0xff]
    %v226 = vld [vmem:[%s3 + $0x18] sm:$0xff]
    %v227 = vld [vmem:[%s3 + $0x20] sm:$0xff]
    %v228 = vld [vmem:[%s3 + $0x28] sm:$0xff]
    %v229 = vld [vmem:[%s3 + $0x30] sm:$0xff]
    %v230 = vld [vmem:[%s3 + $0x38] sm:$0xff]
    %v231 = vld [vmem:[%s3 + $0x40] sm:$0xff]
    %v232 = vld [vmem:[%s3 + $0x48] sm:$0xff]
    %v233 = vld [vmem:[%s3 + $0x50] sm:$0xff]
    %v234 = vld [vmem:[%s3 + $0x58] sm:$0xff]
    %v235 = vld [vmem:[%s3 + $0x60] sm:$0xff]
    %v236 = vld [vmem:[%s3 + $0x68] sm:$0xff]
    %v237 = vld [vmem:[%s3 + $0x70] sm:$0xff]
    %v238 = vld [vmem:[%s3 + $0x78] sm:$0xff]
    %v239 = vld [vmem:[%s3 + $0x80] sm:$0xff]
    %v240 = vld [vmem:[%s3 + $0x88] sm:$0xff]
    %v241 = vld [vmem:[%s3 + $0x90] sm:$0xff]
    %v242 = vld [vmem:[%s3 + $0x98] sm:$0xff]
    %v243 = vld [vmem:[%s3 + $0xa0] sm:$0xff]
    %v244 = vld [vmem:[%s3 + $0xa8] sm:$0xff]
    %v245 = vld [vmem:[%s3 + $0xb0] sm:$0xff]
    %v246 = vld [vmem:[%s3 + $0xb8] sm:$0xff]
    %v247 = vld [vmem:[%s3 + $0xc0] sm:$0xff]
    %v248 = vld [vmem:[%s3 + $0xc8] sm:$0xff]
    %v249 = vld [vmem:[%s3 + $0xd0] sm:$0xff]
    %v250 = vld [vmem:[%s3 + $0xd8] sm:$0xff]
    %v251 = vld [vmem:[%s3 + $0xe0] sm:$0xff]
    %v252 = vld [vmem:[%s3 + $0xe8] sm:$0xff]
    %v253 = vld [vmem:[%s3 + $0xf0] sm:$0xff]
    %v254 = vld [vmem:[%s3 + $0xf8] sm:$0xff]
    %v255 = vld [vmem:[%s3 + $0x100] sm:$0xff]
    %v256 = vld [vmem:[%s3 + $0x108] sm:$0xff]
    %v257 = vld [vmem:[%s3 + $0x110] sm:$0xff]
    %v258 = vld [vmem:[%s3 + $0x118] sm:$0xff]
    %v259 = vld [vmem:[%s3 + $0x120] sm:$0xff]
    %v260 = vld [vmem:[%s3 + $0x128] sm:$0xff]
    %v261 = vld [vmem:[%s3 + $0x130] sm:$0xff]
    %v262 = vld [vmem:[%s3 + $0x138] sm:$0xff]
    %v263 = vld [vmem:[%s3 + $0x140] sm:$0xff]
    %v264 = vld [vmem:[%s3 + $0x148] sm:$0xff]
    %v265 = vld [vmem:[%s3 + $0x150] sm:$0xff]
    %v266 = vld [vmem:[%s3 + $0x158] sm:$0xff]
    %v267 = vld [vmem:[%s3 + $0x160] sm:$0xff]
    %v268 = vld [vmem:[%s3 + $0x168] sm:$0xff]
    %v269 = vld [vmem:[%s3 + $0x170] sm:$0xff]
    %v270 = vld [vmem:[%s3 + $0x178] sm:$0xff]
    %v271 = vld [vmem:[%s4] sm:$0x7]
    %v273 = vlaneseq
    %v274 = vshrl.u32 %v273, 7
    %v275 = vsub.s32 0, %v274
    %v276 = vrot.slane %v271, %v275
    %v277 = vlaneseq
    %v278 = vshrl.u32 %v277, 7
    %v279 = vsub.s32 1, %v278
    %v280 = vrot.slane %v271, %v279
    %v281 = vlaneseq
    %v282 = vshrl.u32 %v281, 7
    %v283 = vsub.s32 2, %v282
    %v284 = vrot.slane %v271, %v283
    %288 = vmatprep.subr.mxu0 %v224
    %289 = vmatpush1.msra.mxu0 %v223
    %290 = vmatprep.subr.mxu0 %v227
    %291 = vmatpush1.msra.mxu0 %v226
    %292 = vmatprep.subr.mxu0 %v230
    %293 = vmatpush1.msra.mxu0 %v229
    %294 = vmatprep.subr.mxu0 %v233
    %295 = vmatpush1.msra.mxu0 %v232
    %296 = vmatprep.subr.mxu0 %v236
    %297 = vmatpush1.msra.mxu0 %v235
    %298 = vmatprep.subr.mxu0 %v239
    %299 = vmatpush1.msra.mxu0 %v238
    %300 = vmatprep.subr.mxu0 %v242
    %301 = vmatpush1.msra.mxu0 %v241
    %302 = vmatprep.subr.mxu0 %v245
    %303 = vmatpush1.msra.mxu0 %v244
    %304 = vmatprep.subr.mxu0 %v248
    %305 = vmatpush1.msra.mxu0 %v247
    %306 = vmatprep.subr.mxu0 %v251
    %307 = vmatpush1.msra.mxu0 %v250
    %308 = vmatprep.subr.mxu0 %v254
    %309 = vmatpush1.msra.mxu0 %v253
    %310 = vmatprep.subr.mxu0 %v257
    %311 = vmatpush1.msra.mxu0 %v256
    %312 = vmatprep.subr.mxu0 %v260
    %313 = vmatpush1.msra.mxu0 %v259
    %314 = vmatprep.subr.mxu0 %v263
    %315 = vmatpush1.msra.mxu0 %v262
    %316 = vmatprep.subr.mxu0 %v266
    %317 = vmatpush1.msra.mxu0 %v265
    %318 = vmatprep.subr.mxu0 %v269
    %319 = vmatpush1.msra.mxu0 %v268
    %320 = vmatprep.subr.mxu0 0.0
    %321 = vmatpush1.msra.mxu0 0.0
    %322 = vmatprep.subr.mxu0 0.0
    %323 = vmatpush1.msra.mxu0 0.0
    %324 = vmatprep.subr.mxu0 0.0
    %325 = vmatpush1.msra.mxu0 0.0
    %326 = vmatprep.subr.mxu0 0.0
    %327 = vmatpush1.msra.mxu0 0.0
    %328 = vmatprep.subr.mxu0 0.0
    %329 = vmatpush1.msra.mxu0 0.0
    %330 = vmatprep.subr.mxu0 0.0
    %331 = vmatpush1.msra.mxu0 0.0
    %332 = vmatprep.subr.mxu0 0.0
    %333 = vmatpush1.msra.mxu0 0.0
    %334 = vmatprep.subr.mxu0 0.0
    %335 = vmatpush1.msra.mxu0 0.0
    %336 = vmatprep.subr.mxu0 0.0
    %337 = vmatpush1.msra.mxu0 0.0
    %338 = vmatprep.subr.mxu0 0.0
    %339 = vmatpush1.msra.mxu0 0.0
    %340 = vmatprep.subr.mxu0 0.0
    %341 = vmatpush1.msra.mxu0 0.0
    %342 = vmatprep.subr.mxu0 0.0
    %343 = vmatpush1.msra.mxu0 0.0
    %344 = vmatprep.subr.mxu0 0.0
    %345 = vmatpush1.msra.mxu0 0.0
    %346 = vmatprep.subr.mxu0 0.0
    %347 = vmatpush1.msra.mxu0 0.0
    %348 = vmatprep.subr.mxu0 0.0
    %349 = vmatpush1.msra.mxu0 0.0
    %350 = vmatprep.subr.mxu0 0.0
    %351 = vmatpush1.msra.mxu0 0.0
    %352 = vmatprep.mubr.f32.mxu0 0.0
    %353 = vmatmul.mubr.f32.gmra.mrb[0].mxu0 0.0
    %v354 = vpop.f32.mrb[0].mxu0
    %v355 = vadd.f32 %v276, %v354
    %v356 = vpop.f32.mrb[0].mxu0
    %v357 = vadd.f32 %v280, %v356
    %358 = vdwg.mxu0
    %359 = vmatprep.subr.mxu0 0.0
    %360 = vmatpush1.msra.mxu0 %v225
    %361 = vmatprep.subr.mxu0 0.0
    %362 = vmatpush1.msra.mxu0 %v228
    %363 = vmatprep.subr.mxu0 0.0
    %364 = vmatpush1.msra.mxu0 %v231
    %365 = vmatprep.subr.mxu0 0.0
    %366 = vmatpush1.msra.mxu0 %v234
    %367 = vmatprep.subr.mxu0 0.0
    %368 = vmatpush1.msra.mxu0 %v237
    %369 = vmatprep.subr.mxu0 0.0
    %370 = vmatpush1.msra.mxu0 %v240
    %371 = vmatprep.subr.mxu0 0.0
    %372 = vmatpush1.msra.mxu0 %v243
    %373 = vmatprep.subr.mxu0 0.0
    %374 = vmatpush1.msra.mxu0 %v246
    %375 = vmatprep.subr.mxu0 0.0
    %376 = vmatpush1.msra.mxu0 %v249
    %377 = vmatprep.subr.mxu0 0.0
    %378 = vmatpush1.msra.mxu0 %v252
    %379 = vmatprep.subr.mxu0 0.0
    %380 = vmatpush1.msra.mxu0 %v255
    %381 = vmatprep.subr.mxu0 0.0
    %382 = vmatpush1.msra.mxu0 %v258
    %383 = vmatprep.subr.mxu0 0.0
    %384 = vmatpush1.msra.mxu0 %v261
    %385 = vmatprep.subr.mxu0 0.0
    %386 = vmatpush1.msra.mxu0 %v264
    %387 = vmatprep.subr.mxu0 0.0
    %388 = vmatpush1.msra.mxu0 %v267
    %389 = vmatprep.subr.mxu0 0.0
    %390 = vmatpush1.msra.mxu0 %v270
    %391 = vmatprep.subr.mxu0 0.0
    %392 = vmatpush1.msra.mxu0 0.0
    %393 = vmatprep.subr.mxu0 0.0
    %394 = vmatpush1.msra.mxu0 0.0
    %395 = vmatprep.subr.mxu0 0.0
    %396 = vmatpush1.msra.mxu0 0.0
    %397 = vmatprep.subr.mxu0 0.0
    %398 = vmatpush1.msra.mxu0 0.0
    %399 = vmatprep.subr.mxu0 0.0
    %400 = vmatpush1.msra.mxu0 0.0
    %401 = vmatprep.subr.mxu0 0.0
    %402 = vmatpush1.msra.mxu0 0.0
    %403 = vmatprep.subr.mxu0 0.0
    %404 = vmatpush1.msra.mxu0 0.0
    %405 = vmatprep.subr.mxu0 0.0
    %406 = vmatpush1.msra.mxu0 0.0
    %407 = vmatprep.subr.mxu0 0.0
    %408 = vmatpush1.msra.mxu0 0.0
    %409 = vmatprep.subr.mxu0 0.0
    %410 = vmatpush1.msra.mxu0 0.0
    %411 = vmatprep.subr.mxu0 0.0
    %412 = vmatpush1.msra.mxu0 0.0
    %413 = vmatprep.subr.mxu0 0.0
    %414 = vmatpush1.msra.mxu0 0.0
    %415 = vmatprep.subr.mxu0 0.0
    %416 = vmatpush1.msra.mxu0 0.0
    %417 = vmatprep.subr.mxu0 0.0
    %418 = vmatpush1.msra.mxu0 0.0
    %419 = vmatprep.subr.mxu0 0.0
    %420 = vmatpush1.msra.mxu0 0.0
    %421 = vmatprep.subr.mxu0 0.0
    %422 = vmatpush1.msra.mxu0 0.0
    %423 = vmatprep.mubr.f32.mxu0 0.0
    %424 = vmatmul.mubr.f32.gmra.mrb[0].mxu0 0.0
    %v425 = vpop.f32.mrb[0].mxu0
    %v426 = vadd.f32 %v284, %v425
    %v427 = vpop.f32.mrb[0].mxu0
    %428 = vdwg.mxu0
    %v429 = vadd.f32 %v138, %v355
    %v430 = vxor.u32 %v429, 2147483648
    %v431 = vmul.f32 %v430, 1.442695
    %v432 = vpow.pop %v431
    %v433 = vadd.f32 %v432, 1.0
    %v434 = vrcp.pop %v433
    %v435 = vmul.f32 1.0, %v434
    %v436 = vadd.f32 %v140, %v357
    %v437 = vxor.u32 %v436, 2147483648
    %v438 = vmul.f32 %v437, 1.442695
    %v439 = vpow.pop %v438
    %v440 = vadd.f32 %v439, 1.0
    %v441 = vrcp.pop %v440
    %v442 = vmul.f32 1.0, %v441
    %v443 = vmul.f32 %v435, %v426
    %v444 = vadd.f32 %v215, %v443
    %v445 = vtanh.pop %v444
    %v446 = vsub.f32 1.0, %v442
    %v447 = vmul.f32 %v446, %v445
    %v448 = vmul.f32 %v442, 0.0
    %v449 = vadd.f32 %v447, %v448
    %450 = vmatprep.subr.mxu0 %v224
    %451 = vmatpush1.msra.mxu0 %v223
    %452 = vmatprep.subr.mxu0 %v227
    %453 = vmatpush1.msra.mxu0 %v226
    %454 = vmatprep.subr.mxu0 %v230
    %455 = vmatpush1.msra.mxu0 %v229
    %456 = vmatprep.subr.mxu0 %v233
    %457 = vmatpush1.msra.mxu0 %v232
    %458 = vmatprep.subr.mxu0 %v236
    %459 = vmatpush1.msra.mxu0 %v235
    %460 = vmatprep.subr.mxu0 %v239
    %461 = vmatpush1.msra.mxu0 %v238
    %462 = vmatprep.subr.mxu0 %v242
    %463 = vmatpush1.msra.mxu0 %v241
    %464 = vmatprep.subr.mxu0 %v245
    %465 = vmatpush1.msra.mxu0 %v244
    %466 = vmatprep.subr.mxu0 %v248
    %467 = vmatpush1.msra.mxu0 %v247
    %468 = vmatprep.subr.mxu0 %v251
    %469 = vmatpush1.msra.mxu0 %v250
    %470 = vmatprep.subr.mxu0 %v254
    %471 = vmatpush1.msra.mxu0 %v253
    %472 = vmatprep.subr.mxu0 %v257
    %473 = vmatpush1.msra.mxu0 %v256
    %474 = vmatprep.subr.mxu0 %v260
    %475 = vmatpush1.msra.mxu0 %v259
    %476 = vmatprep.subr.mxu0 %v263
    %477 = vmatpush1.msra.mxu0 %v262
    %478 = vmatprep.subr.mxu0 %v266
    %479 = vmatpush1.msra.mxu0 %v265
    %480 = vmatprep.subr.mxu0 %v269
    %481 = vmatpush1.msra.mxu0 %v268
    %482 = vmatprep.subr.mxu0 0.0
    %483 = vmatpush1.msra.mxu0 0.0
    %484 = vmatprep.subr.mxu0 0.0
    %485 = vmatpush1.msra.mxu0 0.0
    %486 = vmatprep.subr.mxu0 0.0
    %487 = vmatpush1.msra.mxu0 0.0
    %488 = vmatprep.subr.mxu0 0.0
    %489 = vmatpush1.msra.mxu0 0.0
    %490 = vmatprep.subr.mxu0 0.0
    %491 = vmatpush1.msra.mxu0 0.0
    %492 = vmatprep.subr.mxu0 0.0
    %493 = vmatpush1.msra.mxu0 0.0
    %494 = vmatprep.subr.mxu0 0.0
    %495 = vmatpush1.msra.mxu0 0.0
    %496 = vmatprep.subr.mxu0 0.0
    %497 = vmatpush1.msra.mxu0 0.0
    %498 = vmatprep.subr.mxu0 0.0
    %499 = vmatpush1.msra.mxu0 0.0
    %500 = vmatprep.subr.mxu0 0.0
    %501 = vmatpush1.msra.mxu0 0.0
    %502 = vmatprep.subr.mxu0 0.0
    %503 = vmatpush1.msra.mxu0 0.0
    %504 = vmatprep.subr.mxu0 0.0
    %505 = vmatpush1.msra.mxu0 0.0
    %506 = vmatprep.subr.mxu0 0.0
    %507 = vmatpush1.msra.mxu0 0.0
    %508 = vmatprep.subr.mxu0 0.0
    %509 = vmatpush1.msra.mxu0 0.0
    %510 = vmatprep.subr.mxu0 0.0
    %511 = vmatpush1.msra.mxu0 0.0
    %512 = vmatprep.subr.mxu0 0.0
    %513 = vmatpush1.msra.mxu0 0.0
    %514 = vmatprep.mubr.f32.mxu0 0.0
    %515 = vmatmul.mubr.f32.gmra.mrb[0].mxu0 %v449
    %v516 = vpop.f32.mrb[0].mxu0
    %v517 = vadd.f32 %v276, %v516
    %v518 = vpop.f32.mrb[0].mxu0
    %v519 = vadd.f32 %v280, %v518
    %520 = vdwg.mxu0
    %521 = vmatprep.subr.mxu0 0.0
    %522 = vmatpush1.msra.mxu0 %v225
    %523 = vmatprep.subr.mxu0 0.0
    %524 = vmatpush1.msra.mxu0 %v228
    %525 = vmatprep.subr.mxu0 0.0
    %526 = vmatpush1.msra.mxu0 %v231
    %527 = vmatprep.subr.mxu0 0.0
    %528 = vmatpush1.msra.mxu0 %v234
    %529 = vmatprep.subr.mxu0 0.0
    %530 = vmatpush1.msra.mxu0 %v237
    %531 = vmatprep.subr.mxu0 0.0
    %532 = vmatpush1.msra.mxu0 %v240
    %533 = vmatprep.subr.mxu0 0.0
    %534 = vmatpush1.msra.mxu0 %v243
    %535 = vmatprep.subr.mxu0 0.0
    %536 = vmatpush1.msra.mxu0 %v246
    %537 = vmatprep.subr.mxu0 0.0
    %538 = vmatpush1.msra.mxu0 %v249
    %539 = vmatprep.subr.mxu0 0.0
    %540 = vmatpush1.msra.mxu0 %v252
    %541 = vmatprep.subr.mxu0 0.0
    %542 = vmatpush1.msra.mxu0 %v255
    %543 = vmatprep.subr.mxu0 0.0
    %544 = vmatpush1.msra.mxu0 %v258
    %545 = vmatprep.subr.mxu0 0.0
    %546 = vmatpush1.msra.mxu0 %v261
    %547 = vmatprep.subr.mxu0 0.0
    %548 = vmatpush1.msra.mxu0 %v264
    %549 = vmatprep.subr.mxu0 0.0
    %550 = vmatpush1.msra.mxu0 %v267
    %551 = vmatprep.subr.mxu0 0.0
    %552 = vmatpush1.msra.mxu0 %v270
    %553 = vmatprep.subr.mxu0 0.0
    %554 = vmatpush1.msra.mxu0 0.0
    %555 = vmatprep.subr.mxu0 0.0
    %556 = vmatpush1.msra.mxu0 0.0
    %557 = vmatprep.subr.mxu0 0.0
    %558 = vmatpush1.msra.mxu0 0.0
    %559 = vmatprep.subr.mxu0 0.0
    %560 = vmatpush1.msra.mxu0 0.0
    %561 = vmatprep.subr.mxu0 0.0
    %562 = vmatpush1.msra.mxu0 0.0
    %563 = vmatprep.subr.mxu0 0.0
    %564 = vmatpush1.msra.mxu0 0.0
    %565 = vmatprep.subr.mxu0 0.0
    %566 = vmatpush1.msra.mxu0 0.0
    %567 = vmatprep.subr.mxu0 0.0
    %568 = vmatpush1.msra.mxu0 0.0
    %569 = vmatprep.subr.mxu0 0.0
    %570 = vmatpush1.msra.mxu0 0.0
    %571 = vmatprep.subr.mxu0 0.0
    %572 = vmatpush1.msra.mxu0 0.0
    %573 = vmatprep.subr.mxu0 0.0
    %574 = vmatpush1.msra.mxu0 0.0
    %575 = vmatprep.subr.mxu0 0.0
    %576 = vmatpush1.msra.mxu0 0.0
    %577 = vmatprep.subr.mxu0 0.0
    %578 = vmatpush1.msra.mxu0 0.0
    %579 = vmatprep.subr.mxu0 0.0
    %580 = vmatpush1.msra.mxu0 0.0
    %581 = vmatprep.subr.mxu0 0.0
    %582 = vmatpush1.msra.mxu0 0.0
    %583 = vmatprep.subr.mxu0 0.0
    %584 = vmatpush1.msra.mxu0 0.0
    %585 = vmatprep.mubr.f32.mxu0 0.0
    %586 = vmatmul.mubr.f32.gmra.mrb[0].mxu0 %v449
    %v587 = vpop.f32.mrb[0].mxu0
    %v588 = vadd.f32 %v284, %v587
    %v589 = vpop.f32.mrb[0].mxu0
    %590 = vdwg.mxu0
    %v592 = vrot.slane %v517, 6
    %v594 = vadd.f32 %v138, %v592
    %v595 = vxor.u32 %v594, 2147483648
    %v596 = vmul.f32 %v595, 1.442695
    %v597 = vpow.pop %v596
    %v598 = vadd.f32 %v597, 1.0
    %v599 = vrcp.pop %v598
    %v600 = vmul.f32 1.0, %v599
    %v602 = vrot.slane %v519, 6
    %v604 = vadd.f32 %v140, %v602
    %v605 = vxor.u32 %v604, 2147483648
    %v606 = vmul.f32 %v605, 1.442695
    %v607 = vpow.pop %v606
    %v608 = vadd.f32 %v607, 1.0
    %v609 = vrcp.pop %v608
    %v610 = vmul.f32 1.0, %v609
    %v612 = vrot.slane %v588, 6
    %v614 = vmul.f32 %v600, %v612
    %v615 = vadd.f32 %v215, %v614
    %v616 = vtanh.pop %v615
    %v617 = vsub.f32 1.0, %v610
    %v618 = vmul.f32 %v617, %v616
    %v620 = vrot.slane %v449, 6
    %v622 = vmul.f32 %v610, %v620
    %v623 = vadd.f32 %v618, %v622
    %v625 = vrot.slane %v623, 2
    %627 = vmatprep.subr.mxu0 %v224
    %628 = vmatpush1.msra.mxu0 %v223
    %629 = vmatprep.subr.mxu0 %v227
    %630 = vmatpush1.msra.mxu0 %v226
    %631 = vmatprep.subr.mxu0 %v230
    %632 = vmatpush1.msra.mxu0 %v229
    %633 = vmatprep.subr.mxu0 %v233
    %634 = vmatpush1.msra.mxu0 %v232
    %635 = vmatprep.subr.mxu0 %v236
    %636 = vmatpush1.msra.mxu0 %v235
    %637 = vmatprep.subr.mxu0 %v239
    %638 = vmatpush1.msra.mxu0 %v238
    %639 = vmatprep.subr.mxu0 %v242
    %640 = vmatpush1.msra.mxu0 %v241
    %641 = vmatprep.subr.mxu0 %v245
    %642 = vmatpush1.msra.mxu0 %v244
    %643 = vmatprep.subr.mxu0 %v248
    %644 = vmatpush1.msra.mxu0 %v247
    %645 = vmatprep.subr.mxu0 %v251
    %646 = vmatpush1.msra.mxu0 %v250
    %647 = vmatprep.subr.mxu0 %v254
    %648 = vmatpush1.msra.mxu0 %v253
    %649 = vmatprep.subr.mxu0 %v257
    %650 = vmatpush1.msra.mxu0 %v256
    %651 = vmatprep.subr.mxu0 %v260
    %652 = vmatpush1.msra.mxu0 %v259
    %653 = vmatprep.subr.mxu0 %v263
    %654 = vmatpush1.msra.mxu0 %v262
    %655 = vmatprep.subr.mxu0 %v266
    %656 = vmatpush1.msra.mxu0 %v265
    %657 = vmatprep.subr.mxu0 %v269
    %658 = vmatpush1.msra.mxu0 %v268
    %659 = vmatprep.subr.mxu0 0.0
    %660 = vmatpush1.msra.mxu0 0.0
    %661 = vmatprep.subr.mxu0 0.0
    %662 = vmatpush1.msra.mxu0 0.0
    %663 = vmatprep.subr.mxu0 0.0
    %664 = vmatpush1.msra.mxu0 0.0
    %665 = vmatprep.subr.mxu0 0.0
    %666 = vmatpush1.msra.mxu0 0.0
    %667 = vmatprep.subr.mxu0 0.0
    %668 = vmatpush1.msra.mxu0 0.0
    %669 = vmatprep.subr.mxu0 0.0
    %670 = vmatpush1.msra.mxu0 0.0
    %671 = vmatprep.subr.mxu0 0.0
    %672 = vmatpush1.msra.mxu0 0.0
    %673 = vmatprep.subr.mxu0 0.0
    %674 = vmatpush1.msra.mxu0 0.0
    %675 = vmatprep.subr.mxu0 0.0
    %676 = vmatpush1.msra.mxu0 0.0
    %677 = vmatprep.subr.mxu0 0.0
    %678 = vmatpush1.msra.mxu0 0.0
    %679 = vmatprep.subr.mxu0 0.0
    %680 = vmatpush1.msra.mxu0 0.0
    %681 = vmatprep.subr.mxu0 0.0
    %682 = vmatpush1.msra.mxu0 0.0
    %683 = vmatprep.subr.mxu0 0.0
    %684 = vmatpush1.msra.mxu0 0.0
    %685 = vmatprep.subr.mxu0 0.0
    %686 = vmatpush1.msra.mxu0 0.0
    %687 = vmatprep.subr.mxu0 0.0
    %688 = vmatpush1.msra.mxu0 0.0
    %689 = vmatprep.subr.mxu0 0.0
    %690 = vmatpush1.msra.mxu0 0.0
    %691 = vmatprep.mubr.f32.mxu0 0.0
    %692 = vmatmul.mubr.f32.gmra.mrb[0].mxu0 %v625
    %v693 = vpop.f32.mrb[0].mxu0
    %v694 = vadd.f32 %v276, %v693
    %v695 = vpop.f32.mrb[0].mxu0
    %v696 = vadd.f32 %v280, %v695
    %697 = vdwg.mxu0
    %698 = vmatprep.subr.mxu0 0.0
    %699 = vmatpush1.msra.mxu0 %v225
    %700 = vmatprep.subr.mxu0 0.0
    %701 = vmatpush1.msra.mxu0 %v228
    %702 = vmatprep.subr.mxu0 0.0
    %703 = vmatpush1.msra.mxu0 %v231
    %704 = vmatprep.subr.mxu0 0.0
    %705 = vmatpush1.msra.mxu0 %v234
    %706 = vmatprep.subr.mxu0 0.0
    %707 = vmatpush1.msra.mxu0 %v237
    %708 = vmatprep.subr.mxu0 0.0
    %709 = vmatpush1.msra.mxu0 %v240
    %710 = vmatprep.subr.mxu0 0.0
    %711 = vmatpush1.msra.mxu0 %v243
    %712 = vmatprep.subr.mxu0 0.0
    %713 = vmatpush1.msra.mxu0 %v246
    %714 = vmatprep.subr.mxu0 0.0
    %715 = vmatpush1.msra.mxu0 %v249
    %716 = vmatprep.subr.mxu0 0.0
    %717 = vmatpush1.msra.mxu0 %v252
    %718 = vmatprep.subr.mxu0 0.0
    %719 = vmatpush1.msra.mxu0 %v255
    %720 = vmatprep.subr.mxu0 0.0
    %721 = vmatpush1.msra.mxu0 %v258
    %722 = vmatprep.subr.mxu0 0.0
    %723 = vmatpush1.msra.mxu0 %v261
    %724 = vmatprep.subr.mxu0 0.0
    %725 = vmatpush1.msra.mxu0 %v264
    %726 = vmatprep.subr.mxu0 0.0
    %727 = vmatpush1.msra.mxu0 %v267
    %728 = vmatprep.subr.mxu0 0.0
    %729 = vmatpush1.msra.mxu0 %v270
    %730 = vmatprep.subr.mxu0 0.0
    %731 = vmatpush1.msra.mxu0 0.0
    %732 = vmatprep.subr.mxu0 0.0
    %733 = vmatpush1.msra.mxu0 0.0
    %734 = vmatprep.subr.mxu0 0.0
    %735 = vmatpush1.msra.mxu0 0.0
    %736 = vmatprep.subr.mxu0 0.0
    %737 = vmatpush1.msra.mxu0 0.0
    %738 = vmatprep.subr.mxu0 0.0
    %739 = vmatpush1.msra.mxu0 0.0
    %740 = vmatprep.subr.mxu0 0.0
    %741 = vmatpush1.msra.mxu0 0.0
    %742 = vmatprep.subr.mxu0 0.0
    %743 = vmatpush1.msra.mxu0 0.0
    %744 = vmatprep.subr.mxu0 0.0
    %745 = vmatpush1.msra.mxu0 0.0
    %746 = vmatprep.subr.mxu0 0.0
    %747 = vmatpush1.msra.mxu0 0.0
    %748 = vmatprep.subr.mxu0 0.0
    %749 = vmatpush1.msra.mxu0 0.0
    %750 = vmatprep.subr.mxu0 0.0
    %751 = vmatpush1.msra.mxu0 0.0
    %752 = vmatprep.subr.mxu0 0.0
    %753 = vmatpush1.msra.mxu0 0.0
    %754 = vmatprep.subr.mxu0 0.0
    %755 = vmatpush1.msra.mxu0 0.0
    %756 = vmatprep.subr.mxu0 0.0
    %757 = vmatpush1.msra.mxu0 0.0
    %758 = vmatprep.subr.mxu0 0.0
    %759 = vmatpush1.msra.mxu0 0.0
    %760 = vmatprep.subr.mxu0 0.0
    %761 = vmatpush1.msra.mxu0 0.0
    %762 = vmatprep.mubr.f32.mxu0 0.0
    %763 = vmatmul.mubr.f32.gmra.mrb[0].mxu0 %v625
    %v764 = vpop.f32.mrb[0].mxu0
    %v765 = vadd.f32 %v284, %v764
    %v766 = vpop.f32.mrb[0].mxu0
    %767 = vdwg.mxu0
    %v769 = vrot.slane %v694, 4
    %v771 = vadd.f32 %v138, %v769
    %v772 = vxor.u32 %v771, 2147483648
    %v773 = vmul.f32 %v772, 1.442695
    %v774 = vpow.pop %v773
    %v775 = vadd.f32 %v774, 1.0
    %v776 = vrcp.pop %v775
    %v777 = vmul.f32 1.0, %v776
    %v779 = vrot.slane %v696, 4
    %v781 = vadd.f32 %v140, %v779
    %v782 = vxor.u32 %v781, 2147483648
    %v783 = vmul.f32 %v782, 1.442695
    %v784 = vpow.pop %v783
    %v785 = vadd.f32 %v784, 1.0
    %v786 = vrcp.pop %v785
    %v787 = vmul.f32 1.0, %v786
    %v789 = vrot.slane %v765, 4
    %v791 = vmul.f32 %v777, %v789
    %v792 = vadd.f32 %v215, %v791
    %v793 = vtanh.pop %v792
    %v794 = vsub.f32 1.0, %v787
    %v795 = vmul.f32 %v794, %v793
    %v796 = vrot.slane %v623, 6
    %v798 = vmul.f32 %v787, %v796
    %v799 = vadd.f32 %v795, %v798
    %v801 = vrot.slane %v799, 4
    %803 = vmatprep.subr.mxu0 %v224
    %804 = vmatpush1.msra.mxu0 %v223
    %805 = vmatprep.subr.mxu0 %v227
    %806 = vmatpush1.msra.mxu0 %v226
    %807 = vmatprep.subr.mxu0 %v230
    %808 = vmatpush1.msra.mxu0 %v229
    %809 = vmatprep.subr.mxu0 %v233
    %810 = vmatpush1.msra.mxu0 %v232
    %811 = vmatprep.subr.mxu0 %v236
    %812 = vmatpush1.msra.mxu0 %v235
    %813 = vmatprep.subr.mxu0 %v239
    %814 = vmatpush1.msra.mxu0 %v238
    %815 = vmatprep.subr.mxu0 %v242
    %816 = vmatpush1.msra.mxu0 %v241
    %817 = vmatprep.subr.mxu0 %v245
    %818 = vmatpush1.msra.mxu0 %v244
    %819 = vmatprep.subr.mxu0 %v248
    %820 = vmatpush1.msra.mxu0 %v247
    %821 = vmatprep.subr.mxu0 %v251
    %822 = vmatpush1.msra.mxu0 %v250
    %823 = vmatprep.subr.mxu0 %v254
    %824 = vmatpush1.msra.mxu0 %v253
    %825 = vmatprep.subr.mxu0 %v257
    %826 = vmatpush1.msra.mxu0 %v256
    %827 = vmatprep.subr.mxu0 %v260
    %828 = vmatpush1.msra.mxu0 %v259
    %829 = vmatprep.subr.mxu0 %v263
    %830 = vmatpush1.msra.mxu0 %v262
    %831 = vmatprep.subr.mxu0 %v266
    %832 = vmatpush1.msra.mxu0 %v265
    %833 = vmatprep.subr.mxu0 %v269
    %834 = vmatpush1.msra.mxu0 %v268
    %835 = vmatprep.subr.mxu0 0.0
    %836 = vmatpush1.msra.mxu0 0.0
    %837 = vmatprep.subr.mxu0 0.0
    %838 = vmatpush1.msra.mxu0 0.0
    %839 = vmatprep.subr.mxu0 0.0
    %840 = vmatpush1.msra.mxu0 0.0
    %841 = vmatprep.subr.mxu0 0.0
    %842 = vmatpush1.msra.mxu0 0.0
    %843 = vmatprep.subr.mxu0 0.0
    %844 = vmatpush1.msra.mxu0 0.0
    %845 = vmatprep.subr.mxu0 0.0
    %846 = vmatpush1.msra.mxu0 0.0
    %847 = vmatprep.subr.mxu0 0.0
    %848 = vmatpush1.msra.mxu0 0.0
    %849 = vmatprep.subr.mxu0 0.0
    %850 = vmatpush1.msra.mxu0 0.0
    %851 = vmatprep.subr.mxu0 0.0
    %852 = vmatpush1.msra.mxu0 0.0
    %853 = vmatprep.subr.mxu0 0.0
    %854 = vmatpush1.msra.mxu0 0.0
    %855 = vmatprep.subr.mxu0 0.0
    %856 = vmatpush1.msra.mxu0 0.0
    %857 = vmatprep.subr.mxu0 0.0
    %858 = vmatpush1.msra.mxu0 0.0
    %859 = vmatprep.subr.mxu0 0.0
    %860 = vmatpush1.msra.mxu0 0.0
    %861 = vmatprep.subr.mxu0 0.0
    %862 = vmatpush1.msra.mxu0 0.0
    %863 = vmatprep.subr.mxu0 0.0
    %864 = vmatpush1.msra.mxu0 0.0
    %865 = vmatprep.subr.mxu0 0.0
    %866 = vmatpush1.msra.mxu0 0.0
    %867 = vmatprep.mubr.f32.mxu0 0.0
    %868 = vmatmul.mubr.f32.gmra.mrb[0].mxu0 %v801
    %v869 = vpop.f32.mrb[0].mxu0
    %v870 = vadd.f32 %v276, %v869
    %v871 = vpop.f32.mrb[0].mxu0
    %v872 = vadd.f32 %v280, %v871
    %873 = vdwg.mxu0
    %874 = vmatprep.subr.mxu0 0.0
    %875 = vmatpush1.msra.mxu0 %v225
    %876 = vmatprep.subr.mxu0 0.0
    %877 = vmatpush1.msra.mxu0 %v228
    %878 = vmatprep.subr.mxu0 0.0
    %879 = vmatpush1.msra.mxu0 %v231
    %880 = vmatprep.subr.mxu0 0.0
    %881 = vmatpush1.msra.mxu0 %v234
    %882 = vmatprep.subr.mxu0 0.0
    %883 = vmatpush1.msra.mxu0 %v237
    %884 = vmatprep.subr.mxu0 0.0
    %885 = vmatpush1.msra.mxu0 %v240
    %886 = vmatprep.subr.mxu0 0.0
    %887 = vmatpush1.msra.mxu0 %v243
    %888 = vmatprep.subr.mxu0 0.0
    %889 = vmatpush1.msra.mxu0 %v246
    %890 = vmatprep.subr.mxu0 0.0
    %891 = vmatpush1.msra.mxu0 %v249
    %892 = vmatprep.subr.mxu0 0.0
    %893 = vmatpush1.msra.mxu0 %v252
    %894 = vmatprep.subr.mxu0 0.0
    %895 = vmatpush1.msra.mxu0 %v255
    %896 = vmatprep.subr.mxu0 0.0
    %897 = vmatpush1.msra.mxu0 %v258
    %898 = vmatprep.subr.mxu0 0.0
    %899 = vmatpush1.msra.mxu0 %v261
    %900 = vmatprep.subr.mxu0 0.0
    %901 = vmatpush1.msra.mxu0 %v264
    %902 = vmatprep.subr.mxu0 0.0
    %903 = vmatpush1.msra.mxu0 %v267
    %904 = vmatprep.subr.mxu0 0.0
    %905 = vmatpush1.msra.mxu0 %v270
    %906 = vmatprep.subr.mxu0 0.0
    %907 = vmatpush1.msra.mxu0 0.0
    %908 = vmatprep.subr.mxu0 0.0
    %909 = vmatpush1.msra.mxu0 0.0
    %910 = vmatprep.subr.mxu0 0.0
    %911 = vmatpush1.msra.mxu0 0.0
    %912 = vmatprep.subr.mxu0 0.0
    %913 = vmatpush1.msra.mxu0 0.0
    %914 = vmatprep.subr.mxu0 0.0
    %915 = vmatpush1.msra.mxu0 0.0
    %916 = vmatprep.subr.mxu0 0.0
    %917 = vmatpush1.msra.mxu0 0.0
    %918 = vmatprep.subr.mxu0 0.0
    %919 = vmatpush1.msra.mxu0 0.0
    %920 = vmatprep.subr.mxu0 0.0
    %921 = vmatpush1.msra.mxu0 0.0
    %922 = vmatprep.subr.mxu0 0.0
    %923 = vmatpush1.msra.mxu0 0.0
    %924 = vmatprep.subr.mxu0 0.0
    %925 = vmatpush1.msra.mxu0 0.0
    %926 = vmatprep.subr.mxu0 0.0
    %927 = vmatpush1.msra.mxu0 0.0
    %928 = vmatprep.subr.mxu0 0.0
    %929 = vmatpush1.msra.mxu0 0.0
    %930 = vmatprep.subr.mxu0 0.0
    %931 = vmatpush1.msra.mxu0 0.0
    %932 = vmatprep.subr.mxu0 0.0
    %933 = vmatpush1.msra.mxu0 0.0
    %934 = vmatprep.subr.mxu0 0.0
    %935 = vmatpush1.msra.mxu0 0.0
    %936 = vmatprep.subr.mxu0 0.0
    %937 = vmatpush1.msra.mxu0 0.0
    %938 = vmatprep.mubr.f32.mxu0 0.0
    %939 = vmatmul.mubr.f32.gmra.mrb[0].mxu0 %v801
    %v940 = vpop.f32.mrb[0].mxu0
    %v941 = vadd.f32 %v284, %v940
    %v942 = vpop.f32.mrb[0].mxu0
    %943 = vdwg.mxu0
    %v945 = vrot.slane %v870, 2
    %v947 = vadd.f32 %v138, %v945
    %v948 = vxor.u32 %v947, 2147483648
    %v949 = vmul.f32 %v948, 1.442695
    %v950 = vpow.pop %v949
    %v951 = vadd.f32 %v950, 1.0
    %v952 = vrcp.pop %v951
    %v953 = vmul.f32 1.0, %v952
    %v955 = vrot.slane %v872, 2
    %v957 = vadd.f32 %v140, %v955
    %v958 = vxor.u32 %v957, 2147483648
    %v959 = vmul.f32 %v958, 1.442695
    %v960 = vpow.pop %v959
    %v961 = vadd.f32 %v960, 1.0
    %v962 = vrcp.pop %v961
    %v963 = vmul.f32 1.0, %v962
    %v965 = vrot.slane %v941, 2
    %v967 = vmul.f32 %v953, %v965
    %v968 = vadd.f32 %v215, %v967
    %v969 = vtanh.pop %v968
    %v970 = vsub.f32 1.0, %v963
    %v971 = vmul.f32 %v970, %v969
    %v972 = vrot.slane %v799, 6
    %v974 = vmul.f32 %v963, %v972
    %v975 = vadd.f32 %v971, %v974
    %v977 = vrot.slane %v975, 6
    %979 = vmatprep.subr.mxu0 %v224
    %980 = vmatpush1.msra.mxu0 %v223
    %981 = vmatprep.subr.mxu0 %v227
    %982 = vmatpush1.msra.mxu0 %v226
    %983 = vmatprep.subr.mxu0 %v230
    %984 = vmatpush1.msra.mxu0 %v229
    %985 = vmatprep.subr.mxu0 %v233
    %986 = vmatpush1.msra.mxu0 %v232
    %987 = vmatprep.subr.mxu0 %v236
    %988 = vmatpush1.msra.mxu0 %v235
    %989 = vmatprep.subr.mxu0 %v239
    %990 = vmatpush1.msra.mxu0 %v238
    %991 = vmatprep.subr.mxu0 %v242
    %992 = vmatpush1.msra.mxu0 %v241
    %993 = vmatprep.subr.mxu0 %v245
    %994 = vmatpush1.msra.mxu0 %v244
    %995 = vmatprep.subr.mxu0 %v248
    %996 = vmatpush1.msra.mxu0 %v247
    %997 = vmatprep.subr.mxu0 %v251
    %998 = vmatpush1.msra.mxu0 %v250
    %999 = vmatprep.subr.mxu0 %v254
    %1000 = vmatpush1.msra.mxu0 %v253
    %1001 = vmatprep.subr.mxu0 %v257
    %1002 = vmatpush1.msra.mxu0 %v256
    %1003 = vmatprep.subr.mxu0 %v260
    %1004 = vmatpush1.msra.mxu0 %v259
    %1005 = vmatprep.subr.mxu0 %v263
    %1006 = vmatpush1.msra.mxu0 %v262
    %1007 = vmatprep.subr.mxu0 %v266
    %1008 = vmatpush1.msra.mxu0 %v265
    %1009 = vmatprep.subr.mxu0 %v269
    %1010 = vmatpush1.msra.mxu0 %v268
    %1011 = vmatprep.subr.mxu0 0.0
    %1012 = vmatpush1.msra.mxu0 0.0
    %1013 = vmatprep.subr.mxu0 0.0
    %1014 = vmatpush1.msra.mxu0 0.0
    %1015 = vmatprep.subr.mxu0 0.0
    %1016 = vmatpush1.msra.mxu0 0.0
    %1017 = vmatprep.subr.mxu0 0.0
    %1018 = vmatpush1.msra.mxu0 0.0
    %1019 = vmatprep.subr.mxu0 0.0
    %1020 = vmatpush1.msra.mxu0 0.0
    %1021 = vmatprep.subr.mxu0 0.0
    %1022 = vmatpush1.msra.mxu0 0.0
    %1023 = vmatprep.subr.mxu0 0.0
    %1024 = vmatpush1.msra.mxu0 0.0
    %1025 = vmatprep.subr.mxu0 0.0
    %1026 = vmatpush1.msra.mxu0 0.0
    %1027 = vmatprep.subr.mxu0 0.0
    %1028 = vmatpush1.msra.mxu0 0.0
    %1029 = vmatprep.subr.mxu0 0.0
    %1030 = vmatpush1.msra.mxu0 0.0
    %1031 = vmatprep.subr.mxu0 0.0
    %1032 = vmatpush1.msra.mxu0 0.0
    %1033 = vmatprep.subr.mxu0 0.0
    %1034 = vmatpush1.msra.mxu0 0.0
    %1035 = vmatprep.subr.mxu0 0.0
    %1036 = vmatpush1.msra.mxu0 0.0
    %1037 = vmatprep.subr.mxu0 0.0
    %1038 = vmatpush1.msra.mxu0 0.0
    %1039 = vmatprep.subr.mxu0 0.0
    %1040 = vmatpush1.msra.mxu0 0.0
    %1041 = vmatprep.subr.mxu0 0.0
    %1042 = vmatpush1.msra.mxu0 0.0
    %1043 = vmatprep.mubr.f32.mxu0 0.0
    %1044 = vmatmul.mubr.f32.gmra.mrb[0].mxu0 %v977
    %v1045 = vpop.f32.mrb[0].mxu0
    %v1046 = vadd.f32 %v276, %v1045
    %v1047 = vpop.f32.mrb[0].mxu0
    %v1048 = vadd.f32 %v280, %v1047
    %1049 = vdwg.mxu0
    %1050 = vmatprep.subr.mxu0 0.0
    %1051 = vmatpush1.msra.mxu0 %v225
    %1052 = vmatprep.subr.mxu0 0.0
    %1053 = vmatpush1.msra.mxu0 %v228
    %1054 = vmatprep.subr.mxu0 0.0
    %1055 = vmatpush1.msra.mxu0 %v231
    %1056 = vmatprep.subr.mxu0 0.0
    %1057 = vmatpush1.msra.mxu0 %v234
    %1058 = vmatprep.subr.mxu0 0.0
    %1059 = vmatpush1.msra.mxu0 %v237
    %1060 = vmatprep.subr.mxu0 0.0
    %1061 = vmatpush1.msra.mxu0 %v240
    %1062 = vmatprep.subr.mxu0 0.0
    %1063 = vmatpush1.msra.mxu0 %v243
    %1064 = vmatprep.subr.mxu0 0.0
    %1065 = vmatpush1.msra.mxu0 %v246
    %1066 = vmatprep.subr.mxu0 0.0
    %1067 = vmatpush1.msra.mxu0 %v249
    %1068 = vmatprep.subr.mxu0 0.0
    %1069 = vmatpush1.msra.mxu0 %v252
    %1070 = vmatprep.subr.mxu0 0.0
    %1071 = vmatpush1.msra.mxu0 %v255
    %1072 = vmatprep.subr.mxu0 0.0
    %1073 = vmatpush1.msra.mxu0 %v258
    %1074 = vmatprep.subr.mxu0 0.0
    %1075 = vmatpush1.msra.mxu0 %v261
    %1076 = vmatprep.subr.mxu0 0.0
    %1077 = vmatpush1.msra.mxu0 %v264
    %1078 = vmatprep.subr.mxu0 0.0
    %1079 = vmatpush1.msra.mxu0 %v267
    %1080 = vmatprep.subr.mxu0 0.0
    %1081 = vmatpush1.msra.mxu0 %v270
    %1082 = vmatprep.subr.mxu0 0.0
    %1083 = vmatpush1.msra.mxu0 0.0
    %1084 = vmatprep.subr.mxu0 0.0
    %1085 = vmatpush1.msra.mxu0 0.0
    %1086 = vmatprep.subr.mxu0 0.0
    %1087 = vmatpush1.msra.mxu0 0.0
    %1088 = vmatprep.subr.mxu0 0.0
    %1089 = vmatpush1.msra.mxu0 0.0
    %1090 = vmatprep.subr.mxu0 0.0
    %1091 = vmatpush1.msra.mxu0 0.0
    %1092 = vmatprep.subr.mxu0 0.0
    %1093 = vmatpush1.msra.mxu0 0.0
    %1094 = vmatprep.subr.mxu0 0.0
    %1095 = vmatpush1.msra.mxu0 0.0
    %1096 = vmatprep.subr.mxu0 0.0
    %1097 = vmatpush1.msra.mxu0 0.0
    %1098 = vmatprep.subr.mxu0 0.0
    %1099 = vmatpush1.msra.mxu0 0.0
    %1100 = vmatprep.subr.mxu0 0.0
    %1101 = vmatpush1.msra.mxu0 0.0
    %1102 = vmatprep.subr.mxu0 0.0
    %1103 = vmatpush1.msra.mxu0 0.0
    %1104 = vmatprep.subr.mxu0 0.0
    %1105 = vmatpush1.msra.mxu0 0.0
    %1106 = vmatprep.subr.mxu0 0.0
    %1107 = vmatpush1.msra.mxu0 0.0
    %1108 = vmatprep.subr.mxu0 0.0
    %1109 = vmatpush1.msra.mxu0 0.0
    %1110 = vmatprep.subr.mxu0 0.0
    %1111 = vmatpush1.msra.mxu0 0.0
    %1112 = vmatprep.subr.mxu0 0.0
    %1113 = vmatpush1.msra.mxu0 0.0
    %1114 = vmatprep.mubr.f32.mxu0 0.0
    %1115 = vmatmul.mubr.f32.gmra.mrb[0].mxu0 %v977
    %v1116 = vpop.f32.mrb[0].mxu0
    %v1117 = vadd.f32 %v284, %v1116
    %v1118 = vpop.f32.mrb[0].mxu0
    %1119 = vdwg.mxu0
    %v1120 = vadd.f32 %v144, %v1046
    %v1121 = vxor.u32 %v1120, 2147483648
    %v1122 = vmul.f32 %v1121, 1.442695
    %v1123 = vpow.pop %v1122
    %v1124 = vadd.f32 %v1123, 1.0
    %v1125 = vrcp.pop %v1124
    %v1126 = vmul.f32 1.0, %v1125
    %v1127 = vadd.f32 %v146, %v1048
    %v1128 = vxor.u32 %v1127, 2147483648
    %v1129 = vmul.f32 %v1128, 1.442695
    %v1130 = vpow.pop %v1129
    %v1131 = vadd.f32 %v1130, 1.0
    %v1132 = vrcp.pop %v1131
    %v1133 = vmul.f32 1.0, %v1132
    %v1134 = vmul.f32 %v1126, %v1117
    %v1135 = vadd.f32 %v220, %v1134
    %v1136 = vtanh.pop %v1135
    %v1137 = vsub.f32 1.0, %v1133
    %v1138 = vmul.f32 %v1137, %v1136
    %v1139 = vmul.f32 %v1133, %v977
    %v1140 = vadd.f32 %v1138, %v1139
    %1141 = vmatprep.subr.mxu0 %v224
    %1142 = vmatpush1.msra.mxu0 %v223
    %1143 = vmatprep.subr.mxu0 %v227
    %1144 = vmatpush1.msra.mxu0 %v226
    %1145 = vmatprep.subr.mxu0 %v230
    %1146 = vmatpush1.msra.mxu0 %v229
    %1147 = vmatprep.subr.mxu0 %v233
    %1148 = vmatpush1.msra.mxu0 %v232
    %1149 = vmatprep.subr.mxu0 %v236
    %1150 = vmatpush1.msra.mxu0 %v235
    %1151 = vmatprep.subr.mxu0 %v239
    %1152 = vmatpush1.msra.mxu0 %v238
    %1153 = vmatprep.subr.mxu0 %v242
    %1154 = vmatpush1.msra.mxu0 %v241
    %1155 = vmatprep.subr.mxu0 %v245
    %1156 = vmatpush1.msra.mxu0 %v244
    %1157 = vmatprep.subr.mxu0 %v248
    %1158 = vmatpush1.msra.mxu0 %v247
    %1159 = vmatprep.subr.mxu0 %v251
    %1160 = vmatpush1.msra.mxu0 %v250
    %1161 = vmatprep.subr.mxu0 %v254
    %1162 = vmatpush1.msra.mxu0 %v253
    %1163 = vmatprep.subr.mxu0 %v257
    %1164 = vmatpush1.msra.mxu0 %v256
    %1165 = vmatprep.subr.mxu0 %v260
    %1166 = vmatpush1.msra.mxu0 %v259
    %1167 = vmatprep.subr.mxu0 %v263
    %1168 = vmatpush1.msra.mxu0 %v262
    %1169 = vmatprep.subr.mxu0 %v266
    %1170 = vmatpush1.msra.mxu0 %v265
    %1171 = vmatprep.subr.mxu0 %v269
    %1172 = vmatpush1.msra.mxu0 %v268
    %1173 = vmatprep.subr.mxu0 0.0
    %1174 = vmatpush1.msra.mxu0 0.0
    %1175 = vmatprep.subr.mxu0 0.0
    %1176 = vmatpush1.msra.mxu0 0.0
    %1177 = vmatprep.subr.mxu0 0.0
    %1178 = vmatpush1.msra.mxu0 0.0
    %1179 = vmatprep.subr.mxu0 0.0
    %1180 = vmatpush1.msra.mxu0 0.0
    %1181 = vmatprep.subr.mxu0 0.0
    %1182 = vmatpush1.msra.mxu0 0.0
    %1183 = vmatprep.subr.mxu0 0.0
    %1184 = vmatpush1.msra.mxu0 0.0
    %1185 = vmatprep.subr.mxu0 0.0
    %1186 = vmatpush1.msra.mxu0 0.0
    %1187 = vmatprep.subr.mxu0 0.0
    %1188 = vmatpush1.msra.mxu0 0.0
    %1189 = vmatprep.subr.mxu0 0.0
    %1190 = vmatpush1.msra.mxu0 0.0
    %1191 = vmatprep.subr.mxu0 0.0
    %1192 = vmatpush1.msra.mxu0 0.0
    %1193 = vmatprep.subr.mxu0 0.0
    %1194 = vmatpush1.msra.mxu0 0.0
    %1195 = vmatprep.subr.mxu0 0.0
    %1196 = vmatpush1.msra.mxu0 0.0
    %1197 = vmatprep.subr.mxu0 0.0
    %1198 = vmatpush1.msra.mxu0 0.0
    %1199 = vmatprep.subr.mxu0 0.0
    %1200 = vmatpush1.msra.mxu0 0.0
    %1201 = vmatprep.subr.mxu0 0.0
    %1202 = vmatpush1.msra.mxu0 0.0
    %1203 = vmatprep.subr.mxu0 0.0
    %1204 = vmatpush1.msra.mxu0 0.0
    %1205 = vmatprep.mubr.f32.mxu0 0.0
    %1206 = vmatmul.mubr.f32.gmra.mrb[0].mxu0 %v1140
    %v1207 = vpop.f32.mrb[0].mxu0
    %v1208 = vadd.f32 %v276, %v1207
    %v1209 = vpop.f32.mrb[0].mxu0
    %v1210 = vadd.f32 %v280, %v1209
    %1211 = vdwg.mxu0
    %1212 = vmatprep.subr.mxu0 0.0
    %1213 = vmatpush1.msra.mxu0 %v225
    %1214 = vmatprep.subr.mxu0 0.0
    %1215 = vmatpush1.msra.mxu0 %v228
    %1216 = vmatprep.subr.mxu0 0.0
    %1217 = vmatpush1.msra.mxu0 %v231
    %1218 = vmatprep.subr.mxu0 0.0
    %1219 = vmatpush1.msra.mxu0 %v234
    %1220 = vmatprep.subr.mxu0 0.0
    %1221 = vmatpush1.msra.mxu0 %v237
    %1222 = vmatprep.subr.mxu0 0.0
    %1223 = vmatpush1.msra.mxu0 %v240
    %1224 = vmatprep.subr.mxu0 0.0
    %1225 = vmatpush1.msra.mxu0 %v243
    %1226 = vmatprep.subr.mxu0 0.0
    %1227 = vmatpush1.msra.mxu0 %v246
    %1228 = vmatprep.subr.mxu0 0.0
    %1229 = vmatpush1.msra.mxu0 %v249
    %1230 = vmatprep.subr.mxu0 0.0
    %1231 = vmatpush1.msra.mxu0 %v252
    %1232 = vmatprep.subr.mxu0 0.0
    %1233 = vmatpush1.msra.mxu0 %v255
    %1234 = vmatprep.subr.mxu0 0.0
    %1235 = vmatpush1.msra.mxu0 %v258
    %1236 = vmatprep.subr.mxu0 0.0
    %1237 = vmatpush1.msra.mxu0 %v261
    %1238 = vmatprep.subr.mxu0 0.0
    %1239 = vmatpush1.msra.mxu0 %v264
    %1240 = vmatprep.subr.mxu0 0.0
    %1241 = vmatpush1.msra.mxu0 %v267
    %1242 = vmatprep.subr.mxu0 0.0
    %1243 = vmatpush1.msra.mxu0 %v270
    %1244 = vmatprep.subr.mxu0 0.0
    %1245 = vmatpush1.msra.mxu0 0.0
    %1246 = vmatprep.subr.mxu0 0.0
    %1247 = vmatpush1.msra.mxu0 0.0
    %1248 = vmatprep.subr.mxu0 0.0
    %1249 = vmatpush1.msra.mxu0 0.0
    %1250 = vmatprep.subr.mxu0 0.0
    %1251 = vmatpush1.msra.mxu0 0.0
    %1252 = vmatprep.subr.mxu0 0.0
    %1253 = vmatpush1.msra.mxu0 0.0
    %1254 = vmatprep.subr.mxu0 0.0
    %1255 = vmatpush1.msra.mxu0 0.0
    %1256 = vmatprep.subr.mxu0 0.0
    %1257 = vmatpush1.msra.mxu0 0.0
    %1258 = vmatprep.subr.mxu0 0.0
    %1259 = vmatpush1.msra.mxu0 0.0
    %1260 = vmatprep.subr.mxu0 0.0
    %1261 = vmatpush1.msra.mxu0 0.0
    %1262 = vmatprep.subr.mxu0 0.0
    %1263 = vmatpush1.msra.mxu0 0.0
    %1264 = vmatprep.subr.mxu0 0.0
    %1265 = vmatpush1.msra.mxu0 0.0
    %1266 = vmatprep.subr.mxu0 0.0
    %1267 = vmatpush1.msra.mxu0 0.0
    %1268 = vmatprep.subr.mxu0 0.0
    %1269 = vmatpush1.msra.mxu0 0.0
    %1270 = vmatprep.subr.mxu0 0.0
    %1271 = vmatpush1.msra.mxu0 0.0
    %1272 = vmatprep.subr.mxu0 0.0
    %1273 = vmatpush1.msra.mxu0 0.0
    %1274 = vmatprep.subr.mxu0 0.0
    %1275 = vmatpush1.msra.mxu0 0.0
    %1276 = vmatprep.mubr.f32.mxu0 0.0
    %1277 = vmatmul.mubr.f32.gmra.mrb[0].mxu0 %v1140
    %v1278 = vpop.f32.mrb[0].mxu0
    %v1279 = vadd.f32 %v284, %v1278
    %v1280 = vpop.f32.mrb[0].mxu0
    %1281 = vdwg.mxu0
    %v1283 = vrot.slane %v1208, 6
    %v1285 = vadd.f32 %v144, %v1283
    %v1286 = vxor.u32 %v1285, 2147483648
    %v1287 = vmul.f32 %v1286, 1.442695
    %v1288 = vpow.pop %v1287
    %v1289 = vadd.f32 %v1288, 1.0
    %v1290 = vrcp.pop %v1289
    %v1291 = vmul.f32 1.0, %v1290
    %v1293 = vrot.slane %v1210, 6
    %v1295 = vadd.f32 %v146, %v1293
    %v1296 = vxor.u32 %v1295, 2147483648
    %v1297 = vmul.f32 %v1296, 1.442695
    %v1298 = vpow.pop %v1297
    %v1299 = vadd.f32 %v1298, 1.0
    %v1300 = vrcp.pop %v1299
    %v1301 = vmul.f32 1.0, %v1300
    %v1303 = vrot.slane %v1279, 6
    %v1305 = vmul.f32 %v1291, %v1303
    %v1306 = vadd.f32 %v220, %v1305
    %v1307 = vtanh.pop %v1306
    %v1308 = vsub.f32 1.0, %v1301
    %v1309 = vmul.f32 %v1308, %v1307
    %v1311 = vrot.slane %v1140, 6
    %v1313 = vmul.f32 %v1301, %v1311
    %v1314 = vadd.f32 %v1309, %v1313
    %v1316 = vrot.slane %v1314, 2
    %1318 = vmatprep.subr.mxu0 %v224
    %1319 = vmatpush1.msra.mxu0 %v223
    %1320 = vmatprep.subr.mxu0 %v227
    %1321 = vmatpush1.msra.mxu0 %v226
    %1322 = vmatprep.subr.mxu0 %v230
    %1323 = vmatpush1.msra.mxu0 %v229
    %1324 = vmatprep.subr.mxu0 %v233
    %1325 = vmatpush1.msra.mxu0 %v232
    %1326 = vmatprep.subr.mxu0 %v236
    %1327 = vmatpush1.msra.mxu0 %v235
    %1328 = vmatprep.subr.mxu0 %v239
    %1329 = vmatpush1.msra.mxu0 %v238
    %1330 = vmatprep.subr.mxu0 %v242
    %1331 = vmatpush1.msra.mxu0 %v241
    %1332 = vmatprep.subr.mxu0 %v245
    %1333 = vmatpush1.msra.mxu0 %v244
    %1334 = vmatprep.subr.mxu0 %v248
    %1335 = vmatpush1.msra.mxu0 %v247
    %1336 = vmatprep.subr.mxu0 %v251
    %1337 = vmatpush1.msra.mxu0 %v250
    %1338 = vmatprep.subr.mxu0 %v254
    %1339 = vmatpush1.msra.mxu0 %v253
    %1340 = vmatprep.subr.mxu0 %v257
    %1341 = vmatpush1.msra.mxu0 %v256
    %1342 = vmatprep.subr.mxu0 %v260
    %1343 = vmatpush1.msra.mxu0 %v259
    %1344 = vmatprep.subr.mxu0 %v263
    %1345 = vmatpush1.msra.mxu0 %v262
    %1346 = vmatprep.subr.mxu0 %v266
    %1347 = vmatpush1.msra.mxu0 %v265
    %1348 = vmatprep.subr.mxu0 %v269
    %1349 = vmatpush1.msra.mxu0 %v268
    %1350 = vmatprep.subr.mxu0 0.0
    %1351 = vmatpush1.msra.mxu0 0.0
    %1352 = vmatprep.subr.mxu0 0.0
    %1353 = vmatpush1.msra.mxu0 0.0
    %1354 = vmatprep.subr.mxu0 0.0
    %1355 = vmatpush1.msra.mxu0 0.0
    %1356 = vmatprep.subr.mxu0 0.0
    %1357 = vmatpush1.msra.mxu0 0.0
    %1358 = vmatprep.subr.mxu0 0.0
    %1359 = vmatpush1.msra.mxu0 0.0
    %1360 = vmatprep.subr.mxu0 0.0
    %1361 = vmatpush1.msra.mxu0 0.0
    %1362 = vmatprep.subr.mxu0 0.0
    %1363 = vmatpush1.msra.mxu0 0.0
    %1364 = vmatprep.subr.mxu0 0.0
    %1365 = vmatpush1.msra.mxu0 0.0
    %1366 = vmatprep.subr.mxu0 0.0
    %1367 = vmatpush1.msra.mxu0 0.0
    %1368 = vmatprep.subr.mxu0 0.0
    %1369 = vmatpush1.msra.mxu0 0.0
    %1370 = vmatprep.subr.mxu0 0.0
    %1371 = vmatpush1.msra.mxu0 0.0
    %1372 = vmatprep.subr.mxu0 0.0
    %1373 = vmatpush1.msra.mxu0 0.0
    %1374 = vmatprep.subr.mxu0 0.0
    %1375 = vmatpush1.msra.mxu0 0.0
    %1376 = vmatprep.subr.mxu0 0.0
    %1377 = vmatpush1.msra.mxu0 0.0
    %1378 = vmatprep.subr.mxu0 0.0
    %1379 = vmatpush1.msra.mxu0 0.0
    %1380 = vmatprep.subr.mxu0 0.0
    %1381 = vmatpush1.msra.mxu0 0.0
    %1382 = vmatprep.mubr.f32.mxu0 0.0
    %1383 = vmatmul.mubr.f32.gmra.mrb[0].mxu0 %v1316
    %v1384 = vpop.f32.mrb[0].mxu0
    %v1385 = vadd.f32 %v276, %v1384
    %v1386 = vpop.f32.mrb[0].mxu0
    %v1387 = vadd.f32 %v280, %v1386
    %1388 = vdwg.mxu0
    %1389 = vmatprep.subr.mxu0 0.0
    %1390 = vmatpush1.msra.mxu0 %v225
    %1391 = vmatprep.subr.mxu0 0.0
    %1392 = vmatpush1.msra.mxu0 %v228
    %1393 = vmatprep.subr.mxu0 0.0
    %1394 = vmatpush1.msra.mxu0 %v231
    %1395 = vmatprep.subr.mxu0 0.0
    %1396 = vmatpush1.msra.mxu0 %v234
    %1397 = vmatprep.subr.mxu0 0.0
    %1398 = vmatpush1.msra.mxu0 %v237
    %1399 = vmatprep.subr.mxu0 0.0
    %1400 = vmatpush1.msra.mxu0 %v240
    %1401 = vmatprep.subr.mxu0 0.0
    %1402 = vmatpush1.msra.mxu0 %v243
    %1403 = vmatprep.subr.mxu0 0.0
    %1404 = vmatpush1.msra.mxu0 %v246
    %1405 = vmatprep.subr.mxu0 0.0
    %1406 = vmatpush1.msra.mxu0 %v249
    %1407 = vmatprep.subr.mxu0 0.0
    %1408 = vmatpush1.msra.mxu0 %v252
    %1409 = vmatprep.subr.mxu0 0.0
    %1410 = vmatpush1.msra.mxu0 %v255
    %1411 = vmatprep.subr.mxu0 0.0
    %1412 = vmatpush1.msra.mxu0 %v258
    %1413 = vmatprep.subr.mxu0 0.0
    %1414 = vmatpush1.msra.mxu0 %v261
    %1415 = vmatprep.subr.mxu0 0.0
    %1416 = vmatpush1.msra.mxu0 %v264
    %1417 = vmatprep.subr.mxu0 0.0
    %1418 = vmatpush1.msra.mxu0 %v267
    %1419 = vmatprep.subr.mxu0 0.0
    %1420 = vmatpush1.msra.mxu0 %v270
    %1421 = vmatprep.subr.mxu0 0.0
    %1422 = vmatpush1.msra.mxu0 0.0
    %1423 = vmatprep.subr.mxu0 0.0
    %1424 = vmatpush1.msra.mxu0 0.0
    %1425 = vmatprep.subr.mxu0 0.0
    %1426 = vmatpush1.msra.mxu0 0.0
    %1427 = vmatprep.subr.mxu0 0.0
    %1428 = vmatpush1.msra.mxu0 0.0
    %1429 = vmatprep.subr.mxu0 0.0
    %1430 = vmatpush1.msra.mxu0 0.0
    %1431 = vmatprep.subr.mxu0 0.0
    %1432 = vmatpush1.msra.mxu0 0.0
    %1433 = vmatprep.subr.mxu0 0.0
    %1434 = vmatpush1.msra.mxu0 0.0
    %1435 = vmatprep.subr.mxu0 0.0
    %1436 = vmatpush1.msra.mxu0 0.0
    %1437 = vmatprep.subr.mxu0 0.0
    %1438 = vmatpush1.msra.mxu0 0.0
    %1439 = vmatprep.subr.mxu0 0.0
    %1440 = vmatpush1.msra.mxu0 0.0
    %1441 = vmatprep.subr.mxu0 0.0
    %1442 = vmatpush1.msra.mxu0 0.0
    %1443 = vmatprep.subr.mxu0 0.0
    %1444 = vmatpush1.msra.mxu0 0.0
    %1445 = vmatprep.subr.mxu0 0.0
    %1446 = vmatpush1.msra.mxu0 0.0
    %1447 = vmatprep.subr.mxu0 0.0
    %1448 = vmatpush1.msra.mxu0 0.0
    %1449 = vmatprep.subr.mxu0 0.0
    %1450 = vmatpush1.msra.mxu0 0.0
    %1451 = vmatprep.subr.mxu0 0.0
    %1452 = vmatpush1.msra.mxu0 0.0
    %1453 = vmatprep.mubr.f32.mxu0 0.0
    %1454 = vmatmul.mubr.f32.gmra.mrb[0].mxu0 %v1316
    %v1455 = vpop.f32.mrb[0].mxu0
    %v1456 = vadd.f32 %v284, %v1455
    %v1457 = vpop.f32.mrb[0].mxu0
    %1458 = vdwg.mxu0
    %v1460 = vrot.slane %v1385, 4
    %v1462 = vadd.f32 %v144, %v1460
    %v1463 = vxor.u32 %v1462, 2147483648
    %v1464 = vmul.f32 %v1463, 1.442695
    %v1465 = vpow.pop %v1464
    %v1466 = vadd.f32 %v1465, 1.0
    %v1467 = vrcp.pop %v1466
    %v1468 = vmul.f32 1.0, %v1467
    %v1470 = vrot.slane %v1387, 4
    %v1472 = vadd.f32 %v146, %v1470
    %v1473 = vxor.u32 %v1472, 2147483648
    %v1474 = vmul.f32 %v1473, 1.442695
    %v1475 = vpow.pop %v1474
    %v1476 = vadd.f32 %v1475, 1.0
    %v1477 = vrcp.pop %v1476
    %v1478 = vmul.f32 1.0, %v1477
    %v1480 = vrot.slane %v1456, 4
    %v1482 = vmul.f32 %v1468, %v1480
    %v1483 = vadd.f32 %v220, %v1482
    %v1484 = vtanh.pop %v1483
    %v1485 = vsub.f32 1.0, %v1478
    %v1486 = vmul.f32 %v1485, %v1484
    %v1487 = vrot.slane %v1314, 6
    %v1489 = vmul.f32 %v1478, %v1487
    %v1490 = vadd.f32 %v1486, %v1489
    %v1492 = vrot.slane %v1490, 4
    %1494 = vmatprep.subr.mxu0 %v224
    %1495 = vmatpush1.msra.mxu0 %v223
    %1496 = vmatprep.subr.mxu0 %v227
    %1497 = vmatpush1.msra.mxu0 %v226
    %1498 = vmatprep.subr.mxu0 %v230
    %1499 = vmatpush1.msra.mxu0 %v229
    %1500 = vmatprep.subr.mxu0 %v233
    %1501 = vmatpush1.msra.mxu0 %v232
    %1502 = vmatprep.subr.mxu0 %v236
    %1503 = vmatpush1.msra.mxu0 %v235
    %1504 = vmatprep.subr.mxu0 %v239
    %1505 = vmatpush1.msra.mxu0 %v238
    %1506 = vmatprep.subr.mxu0 %v242
    %1507 = vmatpush1.msra.mxu0 %v241
    %1508 = vmatprep.subr.mxu0 %v245
    %1509 = vmatpush1.msra.mxu0 %v244
    %1510 = vmatprep.subr.mxu0 %v248
    %1511 = vmatpush1.msra.mxu0 %v247
    %1512 = vmatprep.subr.mxu0 %v251
    %1513 = vmatpush1.msra.mxu0 %v250
    %1514 = vmatprep.subr.mxu0 %v254
    %1515 = vmatpush1.msra.mxu0 %v253
    %1516 = vmatprep.subr.mxu0 %v257
    %1517 = vmatpush1.msra.mxu0 %v256
    %1518 = vmatprep.subr.mxu0 %v260
    %1519 = vmatpush1.msra.mxu0 %v259
    %1520 = vmatprep.subr.mxu0 %v263
    %1521 = vmatpush1.msra.mxu0 %v262
    %1522 = vmatprep.subr.mxu0 %v266
    %1523 = vmatpush1.msra.mxu0 %v265
    %1524 = vmatprep.subr.mxu0 %v269
    %1525 = vmatpush1.msra.mxu0 %v268
    %1526 = vmatprep.subr.mxu0 0.0
    %1527 = vmatpush1.msra.mxu0 0.0
    %1528 = vmatprep.subr.mxu0 0.0
    %1529 = vmatpush1.msra.mxu0 0.0
    %1530 = vmatprep.subr.mxu0 0.0
    %1531 = vmatpush1.msra.mxu0 0.0
    %1532 = vmatprep.subr.mxu0 0.0
    %1533 = vmatpush1.msra.mxu0 0.0
    %1534 = vmatprep.subr.mxu0 0.0
    %1535 = vmatpush1.msra.mxu0 0.0
    %1536 = vmatprep.subr.mxu0 0.0
    %1537 = vmatpush1.msra.mxu0 0.0
    %1538 = vmatprep.subr.mxu0 0.0
    %1539 = vmatpush1.msra.mxu0 0.0
    %1540 = vmatprep.subr.mxu0 0.0
    %1541 = vmatpush1.msra.mxu0 0.0
    %1542 = vmatprep.subr.mxu0 0.0
    %1543 = vmatpush1.msra.mxu0 0.0
    %1544 = vmatprep.subr.mxu0 0.0
    %1545 = vmatpush1.msra.mxu0 0.0
    %1546 = vmatprep.subr.mxu0 0.0
    %1547 = vmatpush1.msra.mxu0 0.0
    %1548 = vmatprep.subr.mxu0 0.0
    %1549 = vmatpush1.msra.mxu0 0.0
    %1550 = vmatprep.subr.mxu0 0.0
    %1551 = vmatpush1.msra.mxu0 0.0
    %1552 = vmatprep.subr.mxu0 0.0
    %1553 = vmatpush1.msra.mxu0 0.0
    %1554 = vmatprep.subr.mxu0 0.0
    %1555 = vmatpush1.msra.mxu0 0.0
    %1556 = vmatprep.subr.mxu0 0.0
    %1557 = vmatpush1.msra.mxu0 0.0
    %1558 = vmatprep.mubr.f32.mxu0 0.0
    %1559 = vmatmul.mubr.f32.gmra.mrb[0].mxu0 %v1492
    %v1560 = vpop.f32.mrb[0].mxu0
    %v1561 = vadd.f32 %v276, %v1560
    %v1562 = vpop.f32.mrb[0].mxu0
    %v1563 = vadd.f32 %v280, %v1562
    %1564 = vdwg.mxu0
    %1565 = vmatprep.subr.mxu0 0.0
    %1566 = vmatpush1.msra.mxu0 %v225
    %1567 = vmatprep.subr.mxu0 0.0
    %1568 = vmatpush1.msra.mxu0 %v228
    %1569 = vmatprep.subr.mxu0 0.0
    %1570 = vmatpush1.msra.mxu0 %v231
    %1571 = vmatprep.subr.mxu0 0.0
    %1572 = vmatpush1.msra.mxu0 %v234
    %1573 = vmatprep.subr.mxu0 0.0
    %1574 = vmatpush1.msra.mxu0 %v237
    %1575 = vmatprep.subr.mxu0 0.0
    %1576 = vmatpush1.msra.mxu0 %v240
    %1577 = vmatprep.subr.mxu0 0.0
    %1578 = vmatpush1.msra.mxu0 %v243
    %1579 = vmatprep.subr.mxu0 0.0
    %1580 = vmatpush1.msra.mxu0 %v246
    %1581 = vmatprep.subr.mxu0 0.0
    %1582 = vmatpush1.msra.mxu0 %v249
    %1583 = vmatprep.subr.mxu0 0.0
    %1584 = vmatpush1.msra.mxu0 %v252
    %1585 = vmatprep.subr.mxu0 0.0
    %1586 = vmatpush1.msra.mxu0 %v255
    %1587 = vmatprep.subr.mxu0 0.0
    %1588 = vmatpush1.msra.mxu0 %v258
    %1589 = vmatprep.subr.mxu0 0.0
    %1590 = vmatpush1.msra.mxu0 %v261
    %1591 = vmatprep.subr.mxu0 0.0
    %1592 = vmatpush1.msra.mxu0 %v264
    %1593 = vmatprep.subr.mxu0 0.0
    %1594 = vmatpush1.msra.mxu0 %v267
    %1595 = vmatprep.subr.mxu0 0.0
    %1596 = vmatpush1.msra.mxu0 %v270
    %1597 = vmatprep.subr.mxu0 0.0
    %1598 = vmatpush1.msra.mxu0 0.0
    %1599 = vmatprep.subr.mxu0 0.0
    %1600 = vmatpush1.msra.mxu0 0.0
    %1601 = vmatprep.subr.mxu0 0.0
    %1602 = vmatpush1.msra.mxu0 0.0
    %1603 = vmatprep.subr.mxu0 0.0
    %1604 = vmatpush1.msra.mxu0 0.0
    %1605 = vmatprep.subr.mxu0 0.0
    %1606 = vmatpush1.msra.mxu0 0.0
    %1607 = vmatprep.subr.mxu0 0.0
    %1608 = vmatpush1.msra.mxu0 0.0
    %1609 = vmatprep.subr.mxu0 0.0
    %1610 = vmatpush1.msra.mxu0 0.0
    %1611 = vmatprep.subr.mxu0 0.0
    %1612 = vmatpush1.msra.mxu0 0.0
    %1613 = vmatprep.subr.mxu0 0.0
    %1614 = vmatpush1.msra.mxu0 0.0
    %1615 = vmatprep.subr.mxu0 0.0
    %1616 = vmatpush1.msra.mxu0 0.0
    %1617 = vmatprep.subr.mxu0 0.0
    %1618 = vmatpush1.msra.mxu0 0.0
    %1619 = vmatprep.subr.mxu0 0.0
    %1620 = vmatpush1.msra.mxu0 0.0
    %1621 = vmatprep.subr.mxu0 0.0
    %1622 = vmatpush1.msra.mxu0 0.0
    %1623 = vmatprep.subr.mxu0 0.0
    %1624 = vmatpush1.msra.mxu0 0.0
    %1625 = vmatprep.subr.mxu0 0.0
    %1626 = vmatpush1.msra.mxu0 0.0
    %1627 = vmatprep.subr.mxu0 0.0
    %1628 = vmatpush1.msra.mxu0 0.0
    %1629 = vmatprep.mubr.f32.mxu0 0.0
    %1630 = vmatmul.mubr.f32.gmra.mrb[0].mxu0 %v1492
    %v1631 = vpop.f32.mrb[0].mxu0
    %v1632 = vadd.f32 %v284, %v1631
    %v1633 = vpop.f32.mrb[0].mxu0
    %1634 = vdwg.mxu0
    %v1636 = vrot.slane %v1561, 2
    %v1638 = vadd.f32 %v144, %v1636
    %v1639 = vxor.u32 %v1638, 2147483648
    %v1640 = vmul.f32 %v1639, 1.442695
    %v1641 = vpow.pop %v1640
    %v1642 = vadd.f32 %v1641, 1.0
    %v1643 = vrcp.pop %v1642
    %v1644 = vmul.f32 1.0, %v1643
    %v1646 = vrot.slane %v1563, 2
    %v1648 = vadd.f32 %v146, %v1646
    %v1649 = vxor.u32 %v1648, 2147483648
    %v1650 = vmul.f32 %v1649, 1.442695
    %v1651 = vpow.pop %v1650
    %v1652 = vadd.f32 %v1651, 1.0
    %v1653 = vrcp.pop %v1652
    %v1654 = vmul.f32 1.0, %v1653
    %v1656 = vrot.slane %v1632, 2
    %v1658 = vmul.f32 %v1644, %v1656
    %v1659 = vadd.f32 %v220, %v1658
    %v1660 = vtanh.pop %v1659
    %v1661 = vsub.f32 1.0, %v1654
    %v1662 = vmul.f32 %v1661, %v1660
    %v1663 = vrot.slane %v1490, 6
    %v1665 = vmul.f32 %v1654, %v1663
    %v1666 = vadd.f32 %v1662, %v1665
    %v1667 = vld [vmem:[%s5] sm:$0xff]
    %v1668 = vld [vmem:[%s5 + $0x8] sm:$0xff]
    %v1669 = vld [vmem:[%s5 + $0x10] sm:$0xff]
    %v1670 = vld [vmem:[%s5 + $0x18] sm:$0xff]
    %v1671 = vld [vmem:[%s5 + $0x20] sm:$0xff]
    %v1672 = vld [vmem:[%s5 + $0x28] sm:$0xff]
    %v1673 = vld [vmem:[%s5 + $0x30] sm:$0xff]
    %v1674 = vld [vmem:[%s5 + $0x38] sm:$0xff]
    %v1675 = vld [vmem:[%s5 + $0x40] sm:$0xff]
    %v1676 = vld [vmem:[%s5 + $0x48] sm:$0xff]
    %v1677 = vld [vmem:[%s5 + $0x50] sm:$0xff]
    %v1678 = vld [vmem:[%s5 + $0x58] sm:$0xff]
    %v1679 = vld [vmem:[%s5 + $0x60] sm:$0xff]
    %v1680 = vld [vmem:[%s5 + $0x68] sm:$0xff]
    %v1681 = vld [vmem:[%s5 + $0x70] sm:$0xff]
    %v1682 = vld [vmem:[%s5 + $0x78] sm:$0xff]
    %v1683 = vld [vmem:[%s6] sm:$0x1]
    %v1685 = vlaneseq
    %v1686 = vshrl.u32 %v1685, 7
    %v1687 = vsub.s32 0, %v1686
    %v1688 = vrot.slane %v1683, %v1687
    %v1691 = vrot.slane %v1666, 6
    %1693 = vmatprep.subr.mxu0 0.0
    %1694 = vmatpush1.msra.mxu0 %v1667
    %1695 = vmatprep.subr.mxu0 0.0
    %1696 = vmatpush1.msra.mxu0 %v1668
    %1697 = vmatprep.subr.mxu0 0.0
    %1698 = vmatpush1.msra.mxu0 %v1669
    %1699 = vmatprep.subr.mxu0 0.0
    %1700 = vmatpush1.msra.mxu0 %v1670
    %1701 = vmatprep.subr.mxu0 0.0
    %1702 = vmatpush1.msra.mxu0 %v1671
    %1703 = vmatprep.subr.mxu0 0.0
    %1704 = vmatpush1.msra.mxu0 %v1672
    %1705 = vmatprep.subr.mxu0 0.0
    %1706 = vmatpush1.msra.mxu0 %v1673
    %1707 = vmatprep.subr.mxu0 0.0
    %1708 = vmatpush1.msra.mxu0 %v1674
    %1709 = vmatprep.subr.mxu0 0.0
    %1710 = vmatpush1.msra.mxu0 %v1675
    %1711 = vmatprep.subr.mxu0 0.0
    %1712 = vmatpush1.msra.mxu0 %v1676
    %1713 = vmatprep.subr.mxu0 0.0
    %1714 = vmatpush1.msra.mxu0 %v1677
    %1715 = vmatprep.subr.mxu0 0.0
    %1716 = vmatpush1.msra.mxu0 %v1678
    %1717 = vmatprep.subr.mxu0 0.0
    %1718 = vmatpush1.msra.mxu0 %v1679
    %1719 = vmatprep.subr.mxu0 0.0
    %1720 = vmatpush1.msra.mxu0 %v1680
    %1721 = vmatprep.subr.mxu0 0.0
    %1722 = vmatpush1.msra.mxu0 %v1681
    %1723 = vmatprep.subr.mxu0 0.0
    %1724 = vmatpush1.msra.mxu0 %v1682
    %1725 = vmatprep.subr.mxu0 0.0
    %1726 = vmatpush1.msra.mxu0 0.0
    %1727 = vmatprep.subr.mxu0 0.0
    %1728 = vmatpush1.msra.mxu0 0.0
    %1729 = vmatprep.subr.mxu0 0.0
    %1730 = vmatpush1.msra.mxu0 0.0
    %1731 = vmatprep.subr.mxu0 0.0
    %1732 = vmatpush1.msra.mxu0 0.0
    %1733 = vmatprep.subr.mxu0 0.0
    %1734 = vmatpush1.msra.mxu0 0.0
    %1735 = vmatprep.subr.mxu0 0.0
    %1736 = vmatpush1.msra.mxu0 0.0
    %1737 = vmatprep.subr.mxu0 0.0
    %1738 = vmatpush1.msra.mxu0 0.0
    %1739 = vmatprep.subr.mxu0 0.0
    %1740 = vmatpush1.msra.mxu0 0.0
    %1741 = vmatprep.subr.mxu0 0.0
    %1742 = vmatpush1.msra.mxu0 0.0
    %1743 = vmatprep.subr.mxu0 0.0
    %1744 = vmatpush1.msra.mxu0 0.0
    %1745 = vmatprep.subr.mxu0 0.0
    %1746 = vmatpush1.msra.mxu0 0.0
    %1747 = vmatprep.subr.mxu0 0.0
    %1748 = vmatpush1.msra.mxu0 0.0
    %1749 = vmatprep.subr.mxu0 0.0
    %1750 = vmatpush1.msra.mxu0 0.0
    %1751 = vmatprep.subr.mxu0 0.0
    %1752 = vmatpush1.msra.mxu0 0.0
    %1753 = vmatprep.subr.mxu0 0.0
    %1754 = vmatpush1.msra.mxu0 0.0
    %1755 = vmatprep.subr.mxu0 0.0
    %1756 = vmatpush1.msra.mxu0 0.0
    %1757 = vmatprep.mubr.f32.mxu0 0.0
    %1758 = vmatmul.mubr.f32.gmra.mrb[0].mxu0 %v1691
    %v1759 = vpop.f32.mrb[0].mxu0
    %v1760 = vadd.f32 %v1688, %v1759
    %v1761 = vpop.f32.mrb[0].mxu0
    %1762 = vdwg.mxu0
    %v1763 = vmax.f32 %v1760, 0.0
    %v1764 = vld [vmem:[%s7] sm:$0xff]
    %v1765 = vld [vmem:[%s7 + $0x8] sm:$0xff]
    %v1766 = vld [vmem:[%s7 + $0x10] sm:$0xff]
    %v1767 = vld [vmem:[%s7 + $0x18] sm:$0xff]
    %v1768 = vld [vmem:[%s8] sm:$0x1]
    %v1770 = vlaneseq
    %v1771 = vshrl.u32 %v1770, 7
    %v1772 = vsub.s32 0, %v1771
    %v1773 = vrot.slane %v1768, %v1772
    %v1776 = vsel %vm64, %v1763, 0
    %1778 = vmatprep.subr.mxu0 0.0
    %1779 = vmatpush1.msra.mxu0 %v1764
    %1780 = vmatprep.subr.mxu0 0.0
    %1781 = vmatpush1.msra.mxu0 %v1765
    %1782 = vmatprep.subr.mxu0 0.0
    %1783 = vmatpush1.msra.mxu0 %v1766
    %1784 = vmatprep.subr.mxu0 0.0
    %1785 = vmatpush1.msra.mxu0 %v1767
    %1786 = vmatprep.subr.mxu0 0.0
    %1787 = vmatpush1.msra.mxu0 0.0
    %1788 = vmatprep.subr.mxu0 0.0
    %1789 = vmatpush1.msra.mxu0 0.0
    %1790 = vmatprep.subr.mxu0 0.0
    %1791 = vmatpush1.msra.mxu0 0.0
    %1792 = vmatprep.subr.mxu0 0.0
    %1793 = vmatpush1.msra.mxu0 0.0
    %1794 = vmatprep.subr.mxu0 0.0
    %1795 = vmatpush1.msra.mxu0 0.0
    %1796 = vmatprep.subr.mxu0 0.0
    %1797 = vmatpush1.msra.mxu0 0.0
    %1798 = vmatprep.subr.mxu0 0.0
    %1799 = vmatpush1.msra.mxu0 0.0
    %1800 = vmatprep.subr.mxu0 0.0
    %1801 = vmatpush1.msra.mxu0 0.0
    %1802 = vmatprep.subr.mxu0 0.0
    %1803 = vmatpush1.msra.mxu0 0.0
    %1804 = vmatprep.subr.mxu0 0.0
    %1805 = vmatpush1.msra.mxu0 0.0
    %1806 = vmatprep.subr.mxu0 0.0
    %1807 = vmatpush1.msra.mxu0 0.0
    %1808 = vmatprep.subr.mxu0 0.0
    %1809 = vmatpush1.msra.mxu0 0.0
    %1810 = vmatprep.subr.mxu0 0.0
    %1811 = vmatpush1.msra.mxu0 0.0
    %1812 = vmatprep.subr.mxu0 0.0
    %1813 = vmatpush1.msra.mxu0 0.0
    %1814 = vmatprep.subr.mxu0 0.0
    %1815 = vmatpush1.msra.mxu0 0.0
    %1816 = vmatprep.subr.mxu0 0.0
    %1817 = vmatpush1.msra.mxu0 0.0
    %1818 = vmatprep.subr.mxu0 0.0
    %1819 = vmatpush1.msra.mxu0 0.0
    %1820 = vmatprep.subr.mxu0 0.0
    %1821 = vmatpush1.msra.mxu0 0.0
    %1822 = vmatprep.subr.mxu0 0.0
    %1823 = vmatpush1.msra.mxu0 0.0
    %1824 = vmatprep.subr.mxu0 0.0
    %1825 = vmatpush1.msra.mxu0 0.0
    %1826 = vmatprep.subr.mxu0 0.0
    %1827 = vmatpush1.msra.mxu0 0.0
    %1828 = vmatprep.subr.mxu0 0.0
    %1829 = vmatpush1.msra.mxu0 0.0
    %1830 = vmatprep.subr.mxu0 0.0
    %1831 = vmatpush1.msra.mxu0 0.0
    %1832 = vmatprep.subr.mxu0 0.0
    %1833 = vmatpush1.msra.mxu0 0.0
    %1834 = vmatprep.subr.mxu0 0.0
    %1835 = vmatpush1.msra.mxu0 0.0
    %1836 = vmatprep.subr.mxu0 0.0
    %1837 = vmatpush1.msra.mxu0 0.0
    %1838 = vmatprep.subr.mxu0 0.0
    %1839 = vmatpush1.msra.mxu0 0.0
    %1840 = vmatprep.subr.mxu0 0.0
    %1841 = vmatpush1.msra.mxu0 0.0
    %1842 = vmatprep.mubr.f32.mxu0 0.0
    %1843 = vmatmul.mubr.f32.gmra.mrb[0].mxu0 %v1776
    %v1844 = vpop.f32.mrb[0].mxu0
    %v1845 = vadd.f32 %v1773, %v1844
    %v1846 = vpop.f32.mrb[0].mxu0
    %1847 = vdwg.mxu0
    %vm1848 = vcmask 9216
    %1849 = vst.msk [vmem:[#allocation2] sm:$0x3] %vm1848, %v1845
    // Predicated region
    $region38: #{gru_forward_pallas.1} parent=1 // pred_check
      _
    $region39: #{gru_forward_pallas.1} parent=1 // pred_check_branch
      %1851 = sbr.rel (0) target = $region41
    $region40: #{gru_forward_pallas.1} parent=1 // pred_region
      %s1853 = ssub.s32 32, 32
      %1854 = vsyncadd [#allocation3], %s1853
      %s1856 = sshll.u32 [#allocation2], 4
      %s1857 = int_to_ptr.vmem [resolvable:$true] %s1856
      %1859 = dma.vmem_to_hbm [thread:$0]  %s1857, 32, %s9, [#allocation3]
    $region41: #{gru_forward_pallas.1} parent=1 // pred_fallthru
      _
    // Predicated region
    $region42: #{gru_forward_pallas.1} parent=1 // pred_check
      _
    $region43: #{gru_forward_pallas.1} parent=1 // pred_check_branch
      %1861 = sbr.rel (0) target = $region45
    $region44: #{gru_forward_pallas.1} parent=1 // pred_region
      %1862 = dma.done [#allocation3], 32
    $region45: #{gru_forward_pallas.1} parent=1 // pred_fallthru
      _
    %1863 = vsyncpa [#allocation3], 1

</llo_original>
